<compile_context>
chip_gen: v7x
topology: tpu7x:2x2x1
jax: 0.10.0
libtpu: 0.0.40
codegen_flags: <defaults>
</compile_context>

<pallas_src>
import functools

import jax
import jax.numpy as jnp
import numpy as np
from jax.experimental import pallas as pl
from jax.experimental.pallas import tpu as pltpu


# ----------------------------- Pallas kernels ------------------------------

def _stride1_kernel(x_ref, w1_ref, b1_ref, sel_ref, wdw_ref, bdw_ref,
                    wout_ref, bout_ref, o_ref, *, ntap, chunk, howo, in_c):
    """Stride-1 ShuffleNetV2 block (block_idx != 0), `bt` images per grid step.

    Channel-major layout: lanes carry H*W, sublanes carry channels.

    x_ref   : (bt, Cfull, HW)     input (all channels; shuffle folded into w1)
    w1_ref  : (mid, Cfull)        pw1 weight * BN scale, odd columns only
    b1_ref  : (mid, 1)            pw1 BN shift
    sel_ref : (HW, ntap*chunk)    0/1 tap-selection matrix (stride 1, zero pad)
    wdw_ref : (mid, ntap)         depthwise weight * BN scale, tap-major
    bdw_ref : (mid, 1)            depthwise BN shift
    wout_ref: (out_c, Cfull+mid)  block-diag([even-channel selector | pw2*BN])
    bout_ref: (out_c, 1)          [zeros | pw2 BN shift]
    o_ref   : (bt, out_c, HW)
    """
    # Grid-invariant operands: load once, reuse across the batch tile.
    w1 = w1_ref[...]
    b1 = b1_ref[...]
    sel = sel_ref[...]
    wdw = wdw_ref[...]
    bdw = bdw_ref[...]
    wout = wout_ref[...]
    bout = bout_ref[...]
    wcols = [wdw[:, k:k + 1] for k in range(ntap)]

    for bi in range(x_ref.shape[0]):
        x = x_ref[bi]                                            # (Cfull, HW)

        # pw1 + BN + ReLU (channel shuffle folded into w1's odd columns).
        y1 = jnp.dot(w1, x, preferred_element_type=jnp.float32) + b1
        y1 = jnp.maximum(y1, 0.0)                                # (mid, HW)

        # Depthwise KxK, stride 1: the MXU gathers all K*K shifted taps in one
        # push, then K*K lane-dense VPU FMAs apply the per-channel weights.
        taps = jnp.dot(y1, sel, preferred_element_type=jnp.float32)
        acc = jnp.zeros((y1.shape[0], howo), jnp.float32)
        for k in range(ntap):
            acc = acc + wcols[k] * taps[:, k * chunk:k * chunk + howo]
        acc = acc + bdw                                          # (mid, HW)

        # Fused [even-channel passthrough | pw2 + BN] block-diagonal matmul;
        # ReLU only on the branch rows; one full-width lane-dense store.
        pre = jnp.dot(wout, jnp.concatenate([x, acc], axis=0),
                      preferred_element_type=jnp.float32) + bout
        row = jax.lax.broadcasted_iota(jnp.int32, pre.shape, 0)
        o_ref[bi] = jnp.where(row < in_c, pre,
                              jnp.maximum(pre, 0.0)).astype(o_ref.dtype)


def _stride2_kernel(x_ref, w1_ref, b1_ref, sel_ref, wdw_ref, bdw_ref,
                    wout_ref, bout_ref, o_ref, *, ntap, chunk, howo):
    """Stride-2 ShuffleNetV2 block (block_idx == 0), `bt` images per grid step.

    branch_left (dw on x) and branch (pw1 -> dw) share one tap matmul and one
    block-diagonal output matmul; stride-2 and zero-padding are baked into the
    0/1 tap-selection matrix, so there is no pad scratch and no strided access.

    x_ref   : (bt, Cin, HW)
    w1_ref  : (mid, Cin)          pw1 weight * BN scale
    sel_ref : (HW, ntap*chunk)    0/1 tap-selection matrix (stride 2, zero pad)
    wdw_ref : (Cin+mid, ntap)     [branch_left dw | branch dw] * BN scales
    bdw_ref : (Cin+mid, 1)
    wout_ref: (out_c, Cin+mid)    block-diag([left pw | pw2]) * BN scales
    bout_ref: (out_c, 1)
    o_ref   : (bt, out_c, Ho*Wo)
    """
    w1 = w1_ref[...]
    b1 = b1_ref[...]
    sel = sel_ref[...]
    wdw = wdw_ref[...]
    bdw = bdw_ref[...]
    wout = wout_ref[...]
    bout = bout_ref[...]
    wcols = [wdw[:, k:k + 1] for k in range(ntap)]

    for bi in range(x_ref.shape[0]):
        x = x_ref[bi]                                            # (Cin, HW)

        y1 = jnp.dot(w1, x, preferred_element_type=jnp.float32) + b1
        y1 = jnp.maximum(y1, 0.0)                                # (mid, HW)

        comb = jnp.concatenate([x, y1], axis=0)                  # (Cin+mid, HW)
        taps = jnp.dot(comb, sel, preferred_element_type=jnp.float32)
        acc = jnp.zeros((comb.shape[0], howo), jnp.float32)
        for k in range(ntap):
            acc = acc + wcols[k] * taps[:, k * chunk:k * chunk + howo]
        acc = acc + bdw                                          # (Cin+mid, HoWo)

        out = jnp.dot(wout, acc, preferred_element_type=jnp.float32) + bout
        o_ref[bi] = jnp.maximum(out, 0.0).astype(o_ref.dtype)


# --------------------------- parameter init ---------------------------------

def _bn_fold(gamma, beta, mean, var, eps=1e-5):
    scale = gamma / jnp.sqrt(var + eps)
    shift = beta - mean * scale
    return scale, shift


def _init_bn(key, c):
    k1, k2, k3, k4 = jax.random.split(key, 4)
    gamma = 1.0 + 0.1 * jax.random.normal(k1, (c,), jnp.float32)
    beta = 0.1 * jax.random.normal(k2, (c,), jnp.float32)
    mean = 0.1 * jax.random.normal(k3, (c,), jnp.float32)
    var = jax.random.uniform(k4, (c,), jnp.float32, minval=0.5, maxval=1.5)
    return _bn_fold(gamma, beta, mean, var)


def _init_branch(key, in_c, mid_c, branch_out, k):
    ks = jax.random.split(key, 6)
    return {
        "pw1_w": 0.1 * jax.random.normal(ks[0], (mid_c, in_c), jnp.float32),
        "pw1_bn": _init_bn(ks[1], mid_c),
        "dw_w": 0.1 * jax.random.normal(ks[2], (mid_c, k, k), jnp.float32),
        "dw_bn": _init_bn(ks[3], mid_c),
        "pw2_w": 0.1 * jax.random.normal(ks[4], (branch_out, mid_c), jnp.float32),
        "pw2_bn": _init_bn(ks[5], branch_out),
    }


def _init_branch_left(key, in_c, k):
    ks = jax.random.split(key, 4)
    return {
        "dw_w": 0.1 * jax.random.normal(ks[0], (in_c, k, k), jnp.float32),
        "dw_bn": _init_bn(ks[1], in_c),
        "pw_w": 0.1 * jax.random.normal(ks[2], (in_c, in_c), jnp.float32),
        "pw_bn": _init_bn(ks[3], in_c),
    }


# --------------------------- host-side helpers -------------------------------

def _build_tap_select(H, W, K, pad, stride):
    """0/1 tap-selection matrix of shape (H*W, K*K*chunk).

    Column k*chunk + (ho*Wo + wo) holds a single 1 at the flat input index that
    feeds tap k = i*K + j of output pixel (ho, wo) for a KxK conv with the given
    stride and zero padding; the column is all-zero when the tap falls in the
    padding halo.  chunk is Ho*Wo rounded up to 128 so every per-tap lane slice
    of the matmul result starts on a vreg boundary.
    """
    Ho = (H + 2 * pad - K) // stride + 1
    Wo = (W + 2 * pad - K) // stride + 1
    howo = Ho * Wo
    chunk = ((howo + 127) // 128) * 128
    sel = np.zeros((H * W, K * K * chunk), np.float32)
    for i in range(K):
        for j in range(K):
            k = i * K + j
            for ho in range(Ho):
                h = stride * ho + i - pad
                if h < 0 or h >= H:
                    continue
                for wo in range(Wo):
                    w = stride * wo + j - pad
                    if w < 0 or w >= W:
                        continue
                    sel[h * W + w, k * chunk + ho * Wo + wo] = 1.0
    return jnp.asarray(sel), Ho, Wo, chunk


def _pick_batch_tile(batch, max_bt=8):
    """Largest divisor of `batch` <= max_bt that still leaves >= 2 grid steps
    (so both v7x TensorCores get work); falls back to 1."""
    for bt in range(min(max_bt, batch), 0, -1):
        if batch % bt == 0 and (batch // bt >= 2 or batch == 1):
            return bt
    return 1


# ------------------------------ the module ----------------------------------

class ShuffleNetV2BlockPallas:
    def __init__(self, in_channel, out_channel, mid_channel, kernel_size=3,
                 block_idx=0, key=None):
        if key is None:
            key = jax.random.PRNGKey(0)
        self.block_idx = block_idx
        self.stride = 2 if block_idx == 0 else 1
        self.k = kernel_size
        self.pad = kernel_size // 2
        self.in_channel = in_channel
        self.out_channel = out_channel
        self.mid_channel = mid_channel
        self.branch_out = out_channel - in_channel
        kb, kl = jax.random.split(key)
        self.branch = _init_branch(kb, in_channel, mid_channel, self.branch_out,
                                   kernel_size)
        if block_idx == 0:
            self.branch_left = _init_branch_left(kl, in_channel, kernel_size)
        self.fused = self._build_fused()
        self._sel_cache = {}

    # ---- fold BN scales into weights; merge branches / channel shuffle ----
    def _build_fused(self):
        K2 = self.k * self.k
        in_c = self.in_channel
        bo = self.branch_out
        p = self.branch
        s1, c1 = p["pw1_bn"]
        sd, cd = p["dw_bn"]
        s2, c2 = p["pw2_bn"]
        w1_eff = p["pw1_w"] * s1[:, None]                          # (mid, in_c)
        wdw_eff = (p["dw_w"] * sd[:, None, None]).reshape(-1, K2)  # (mid, K*K)
        w2_eff = p["pw2_w"] * s2[:, None]                          # (bo, mid)
        mid = w1_eff.shape[0]

        if self.block_idx == 0:
            q = self.branch_left
            sld, cld = q["dw_bn"]
            slp, clp = q["pw_bn"]
            wl_dw = (q["dw_w"] * sld[:, None, None]).reshape(-1, K2)  # (in_c, K*K)
            wl_pw = q["pw_w"] * slp[:, None]                          # (in_c, in_c)
            ccomb = in_c + mid
            out_c = in_c + bo
            wout = jnp.zeros((out_c, ccomb), jnp.float32)
            wout = wout.at[:in_c, :in_c].set(wl_pw)
            wout = wout.at[in_c:, in_c:].set(w2_eff)
            return {
                "w1": w1_eff, "b1": c1[:, None],
                "wdw": jnp.concatenate([wl_dw, wdw_eff], axis=0),
                "bdw": jnp.concatenate([cld, cd])[:, None],
                "wout": wout,
                "bout": jnp.concatenate([clp, c2])[:, None],
            }
        else:
            cfull = 2 * in_c
            out_c = in_c + bo
            # channel shuffle: the branch consumes the ODD input channels ->
            # fold into pw1's columns; the EVEN channels are the passthrough
            # half, emitted by exact 0/1 selector rows of the block-diag wout.
            w1s = jnp.zeros((mid, cfull), jnp.float32).at[:, 1::2].set(w1_eff)
            wout = jnp.zeros((out_c, cfull + mid), jnp.float32)
            wout = wout.at[jnp.arange(in_c), 2 * jnp.arange(in_c)].set(1.0)
            wout = wout.at[in_c:, cfull:].set(w2_eff)
            return {
                "w1": w1s, "b1": c1[:, None],
                "wdw": wdw_eff, "bdw": cd[:, None],
                "wout": wout,
                "bout": jnp.concatenate(
                    [jnp.zeros((in_c,), jnp.float32), c2])[:, None],
            }

    # ---- fused Pallas forward ----
    def __call__(self, x_nchw):
        B, C, H, W = x_nchw.shape
        HW = H * W
        x = x_nchw.reshape(B, C, HW)          # channel-major: free reshape (no transpose)
        f = self.fused

        if (H, W) not in self._sel_cache:
            self._sel_cache[(H, W)] = _build_tap_select(
                H, W, self.k, self.pad, self.stride)
        sel, Ho, Wo, chunk = self._sel_cache[(H, W)]
        howo = Ho * Wo
        out_c = self.out_channel
        ntap = self.k * self.k

        bt = _pick_batch_tile(B)
        grid = (B // bt,)

        if self.block_idx == 0:
            kern = functools.partial(_stride2_kernel, ntap=ntap, chunk=chunk,
                                     howo=howo)
        else:
            kern = functools.partial(_stride1_kernel, ntap=ntap, chunk=chunk,
                                     howo=howo, in_c=self.in_channel)

        def const(shape):
            return pl.BlockSpec(shape, lambda g: tuple(0 for _ in shape))

        out = pl.pallas_call(
            kern,
            out_shape=jax.ShapeDtypeStruct((B, out_c, howo), jnp.float32),
            grid_spec=pltpu.PrefetchScalarGridSpec(
                num_scalar_prefetch=0,
                grid=grid,
                in_specs=[
                    pl.BlockSpec((bt, C, HW), lambda g: (g, 0, 0)),
                    const(f["w1"].shape),
                    const(f["b1"].shape),
                    const(sel.shape),
                    const(f["wdw"].shape),
                    const(f["bdw"].shape),
                    const(f["wout"].shape),
                    const(f["bout"].shape),
                ],
                out_specs=pl.BlockSpec((bt, out_c, howo), lambda g: (g, 0, 0)),
            ),
            compiler_params=pltpu.CompilerParams(
                dimension_semantics=("parallel",),
                # Working set (weights + 0/1 tap matrix + double-buffered
                # (bt, C, HW) blocks) is a few MiB; 48 MiB keeps headroom on
                # v7x's 64 MiB VMEM while allowing larger batch tiles on
                # v5e/v6e's 128 MiB.
                vmem_limit_bytes=48 * 1024 * 1024,
            ),
        )(x, f["w1"], f["b1"], sel, f["wdw"], f["bdw"], f["wout"], f["bout"])

        return out.reshape(B, out_c, Ho, Wo)  # already NCHW: free reshape

    # ---- pure-JAX reference (for sanity check) ----
    def reference(self, x_nchw):
        def pw(z, w, bn, relu):
            scale, shift = bn
            y = jnp.einsum("bhwc,oc->bhwo", z, w,
                           precision=jax.lax.Precision.HIGHEST)
            y = y * scale + shift
            return jnp.maximum(y, 0.0) if relu else y

        def dw(z, w, bn, stride, pad):
            scale, shift = bn
            B, H, W, C = z.shape
            K = w.shape[-1]
            zp = jnp.pad(z, ((0, 0), (pad, pad), (pad, pad), (0, 0)))
            Ho = (H + 2 * pad - K) // stride + 1
            Wo = (W + 2 * pad - K) // stride + 1
            acc = jnp.zeros((B, Ho, Wo, C), jnp.float32)
            for i in range(K):
                for j in range(K):
                    patch = zp[:, i:i + (Ho - 1) * stride + 1:stride,
                               j:j + (Wo - 1) * stride + 1:stride, :]
                    acc = acc + patch * w[:, i, j]
            return acc * scale + shift

        def branch(z):
            p = self.branch
            z = pw(z, p["pw1_w"], p["pw1_bn"], relu=True)
            z = dw(z, p["dw_w"], p["dw_bn"], stride=self.stride, pad=self.pad)
            z = pw(z, p["pw2_w"], p["pw2_bn"], relu=True)
            return z

        x = jnp.transpose(x_nchw, (0, 2, 3, 1))
        if self.block_idx == 0:
            p = self.branch_left
            left = dw(x, p["dw_w"], p["dw_bn"], stride=self.stride, pad=self.pad)
            left = pw(left, p["pw_w"], p["pw_bn"], relu=True)
            out = jnp.concatenate([left, branch(x)], axis=-1)
        else:
            out = jnp.concatenate([x[..., 0::2], branch(x[..., 1::2])], axis=-1)
        return jnp.transpose(out, (0, 3, 1, 2))


# --------------------------------- main --------------------------------------

if __name__ == "__main__":
    key = jax.random.PRNGKey(0)
    kx0, kx1, kp0, kp1 = jax.random.split(key, 4)

    # block_idx = 0 : stride-2 downsampling block (branch_left + branch)
    x0 = jax.random.normal(kx0, (2, 4, 16, 16), jnp.float32)      # NCHW
    blk0 = ShuffleNetV2BlockPallas(in_channel=4, out_channel=8, mid_channel=4,
                                   kernel_size=3, block_idx=0, key=kp0)
    y0 = jax.block_until_ready(blk0(x0))
    assert y0.shape == (2, 8, 8, 8), y0.shape
    r0 = blk0.reference(x0)
    assert bool(jnp.allclose(y0, r0, atol=1e-4, rtol=1e-4)), \
        float(jnp.max(jnp.abs(y0 - r0)))

    # block_idx = 1 : stride-1 block with channel shuffle
    x1 = jax.random.normal(kx1, (2, 8, 16, 16), jnp.float32)      # NCHW
    blk1 = ShuffleNetV2BlockPallas(in_channel=4, out_channel=8, mid_channel=4,
                                   kernel_size=3, block_idx=1, key=kp1)
    y1 = jax.block_until_ready(blk1(x1))
    assert y1.shape == (2, 8, 16, 16), y1.shape
    r1 = blk1.reference(x1)
    assert bool(jnp.allclose(y1, r1, atol=1e-4, rtol=1e-4)), \
        float(jnp.max(jnp.abs(y1 - r1)))

    print("KERNEL_OK")
</pallas_src>

<mosaic_0001>
module attributes {stable_mosaic.version = 11 : i64} {
  func.func @_stride2_kernel(%arg0: i32, %arg1: memref<1x4x256xf32, #tpu.memory_space<vmem>>, %arg2: memref<4x4xf32, #tpu.memory_space<vmem>>, %arg3: memref<4x1xf32, #tpu.memory_space<vmem>>, %arg4: memref<256x1152xf32, #tpu.memory_space<vmem>>, %arg5: memref<8x9xf32, #tpu.memory_space<vmem>>, %arg6: memref<8x1xf32, #tpu.memory_space<vmem>>, %arg7: memref<8x8xf32, #tpu.memory_space<vmem>>, %arg8: memref<8x1xf32, #tpu.memory_space<vmem>>, %arg9: memref<1x8x64xf32, #tpu.memory_space<vmem>>) attributes {dimension_semantics = [#tpu.dimension_semantics<parallel>], iteration_bounds = array<i64: 2>, scalar_prefetch = 0 : i64, scratch_operands = 0 : i64, tpu.core_type = #tpu.core_type<tc>, window_params = [{transform_indices = @transform_0, window_bounds = array<i64: 1, 4, 256>}, {pipeline_mode = #tpu.pipeline_mode<synchronous>, transform_indices = @transform_1, window_bounds = array<i64: 4, 4>}, {pipeline_mode = #tpu.pipeline_mode<synchronous>, transform_indices = @transform_2, window_bounds = array<i64: 4, 1>}, {pipeline_mode = #tpu.pipeline_mode<synchronous>, transform_indices = @transform_3, window_bounds = array<i64: 256, 1152>}, {pipeline_mode = #tpu.pipeline_mode<synchronous>, transform_indices = @transform_4, window_bounds = array<i64: 8, 9>}, {pipeline_mode = #tpu.pipeline_mode<synchronous>, transform_indices = @transform_5, window_bounds = array<i64: 8, 1>}, {pipeline_mode = #tpu.pipeline_mode<synchronous>, transform_indices = @transform_6, window_bounds = array<i64: 8, 8>}, {pipeline_mode = #tpu.pipeline_mode<synchronous>, transform_indices = @transform_7, window_bounds = array<i64: 8, 1>}, {transform_indices = @transform_8, window_bounds = array<i64: 1, 8, 64>}]} {
    %c0 = arith.constant 0 : index
    %c0_0 = arith.constant 0 : index
    %0 = vector.load %arg2[%c0, %c0_0] : memref<4x4xf32, #tpu.memory_space<vmem>>, vector<4x4xf32>
    %c0_1 = arith.constant 0 : index
    %c0_2 = arith.constant 0 : index
    %1 = vector.load %arg3[%c0_1, %c0_2] : memref<4x1xf32, #tpu.memory_space<vmem>>, vector<4x1xf32>
    %c0_3 = arith.constant 0 : index
    %c0_4 = arith.constant 0 : index
    %2 = vector.load %arg4[%c0_3, %c0_4] : memref<256x1152xf32, #tpu.memory_space<vmem>>, vector<256x1152xf32>
    %c0_5 = arith.constant 0 : index
    %c0_6 = arith.constant 0 : index
    %3 = vector.load %arg5[%c0_5, %c0_6] : memref<8x9xf32, #tpu.memory_space<vmem>>, vector<8x9xf32>
    %c0_7 = arith.constant 0 : index
    %c0_8 = arith.constant 0 : index
    %4 = vector.load %arg6[%c0_7, %c0_8] : memref<8x1xf32, #tpu.memory_space<vmem>>, vector<8x1xf32>
    %c0_9 = arith.constant 0 : index
    %c0_10 = arith.constant 0 : index
    %5 = vector.load %arg7[%c0_9, %c0_10] : memref<8x8xf32, #tpu.memory_space<vmem>>, vector<8x8xf32>
    %c0_11 = arith.constant 0 : index
    %c0_12 = arith.constant 0 : index
    %6 = vector.load %arg8[%c0_11, %c0_12] : memref<8x1xf32, #tpu.memory_space<vmem>>, vector<8x1xf32>
    %7 = vector.extract_strided_slice %3 {offsets = [0, 0], sizes = [8, 1], strides = [1, 1]} : vector<8x9xf32> to vector<8x1xf32>
    %8 = vector.extract_strided_slice %3 {offsets = [0, 1], sizes = [8, 1], strides = [1, 1]} : vector<8x9xf32> to vector<8x1xf32>
    %9 = vector.extract_strided_slice %3 {offsets = [0, 2], sizes = [8, 1], strides = [1, 1]} : vector<8x9xf32> to vector<8x1xf32>
    %10 = vector.extract_strided_slice %3 {offsets = [0, 3], sizes = [8, 1], strides = [1, 1]} : vector<8x9xf32> to vector<8x1xf32>
    %11 = vector.extract_strided_slice %3 {offsets = [0, 4], sizes = [8, 1], strides = [1, 1]} : vector<8x9xf32> to vector<8x1xf32>
    %12 = vector.extract_strided_slice %3 {offsets = [0, 5], sizes = [8, 1], strides = [1, 1]} : vector<8x9xf32> to vector<8x1xf32>
    %13 = vector.extract_strided_slice %3 {offsets = [0, 6], sizes = [8, 1], strides = [1, 1]} : vector<8x9xf32> to vector<8x1xf32>
    %14 = vector.extract_strided_slice %3 {offsets = [0, 7], sizes = [8, 1], strides = [1, 1]} : vector<8x9xf32> to vector<8x1xf32>
    %15 = vector.extract_strided_slice %3 {offsets = [0, 8], sizes = [8, 1], strides = [1, 1]} : vector<8x9xf32> to vector<8x1xf32>
    %c0_13 = arith.constant 0 : index
    %c0_14 = arith.constant 0 : index
    %c0_15 = arith.constant 0 : index
    %16 = vector.load %arg1[%c0_13, %c0_14, %c0_15] : memref<1x4x256xf32, #tpu.memory_space<vmem>>, vector<1x4x256xf32>
    %17 = vector.shape_cast %16 : vector<1x4x256xf32> to vector<4x256xf32>
    %cst = arith.constant dense<0.000000e+00> : vector<4x256xf32>
    %18 = tpu.matmul %0, %17, %cst {dimension_numbers = #tpu.dot_dimension_numbers<[1], [0], [0], [1], [0, 0, 1, 1], [], []>} : vector<4x4xf32>, vector<4x256xf32>, vector<4x256xf32> -> vector<4x256xf32>
    %19 = vector.broadcast %1 : vector<4x1xf32> to vector<4x256xf32>
    %20 = arith.addf %18, %19 : vector<4x256xf32>
    %cst_16 = arith.constant 0.000000e+00 : f32
    %21 = vector.broadcast %cst_16 : f32 to vector<4x256xf32>
    %22 = arith.maximumf %20, %21 : vector<4x256xf32>
    %23 = tpu.concatenate %17, %22 in 0 : vector<4x256xf32>, vector<4x256xf32> -> vector<8x256xf32>
    %cst_17 = arith.constant dense<0.000000e+00> : vector<8x1152xf32>
    %24 = tpu.matmul %23, %2, %cst_17 {dimension_numbers = #tpu.dot_dimension_numbers<[1], [0], [0], [1], [0, 0, 1, 1], [], []>} : vector<8x256xf32>, vector<256x1152xf32>, vector<8x1152xf32> -> vector<8x1152xf32>
    %cst_18 = arith.constant 0.000000e+00 : f32
    %25 = vector.broadcast %cst_18 : f32 to vector<8x64xf32>
    %26 = vector.extract_strided_slice %24 {offsets = [0, 0], sizes = [8, 64], strides = [1, 1]} : vector<8x1152xf32> to vector<8x64xf32>
    %27 = vector.broadcast %7 : vector<8x1xf32> to vector<8x64xf32>
    %28 = arith.mulf %27, %26 : vector<8x64xf32>
    %29 = arith.addf %25, %28 : vector<8x64xf32>
    %30 = vector.extract_strided_slice %24 {offsets = [0, 128], sizes = [8, 64], strides = [1, 1]} : vector<8x1152xf32> to vector<8x64xf32>
    %31 = vector.broadcast %8 : vector<8x1xf32> to vector<8x64xf32>
    %32 = arith.mulf %31, %30 : vector<8x64xf32>
    %33 = arith.addf %29, %32 : vector<8x64xf32>
    %34 = vector.extract_strided_slice %24 {offsets = [0, 256], sizes = [8, 64], strides = [1, 1]} : vector<8x1152xf32> to vector<8x64xf32>
    %35 = vector.broadcast %9 : vector<8x1xf32> to vector<8x64xf32>
    %36 = arith.mulf %35, %34 : vector<8x64xf32>
    %37 = arith.addf %33, %36 : vector<8x64xf32>
    %38 = vector.extract_strided_slice %24 {offsets = [0, 384], sizes = [8, 64], strides = [1, 1]} : vector<8x1152xf32> to vector<8x64xf32>
    %39 = vector.broadcast %10 : vector<8x1xf32> to vector<8x64xf32>
    %40 = arith.mulf %39, %38 : vector<8x64xf32>
    %41 = arith.addf %37, %40 : vector<8x64xf32>
    %42 = vector.extract_strided_slice %24 {offsets = [0, 512], sizes = [8, 64], strides = [1, 1]} : vector<8x1152xf32> to vector<8x64xf32>
    %43 = vector.broadcast %11 : vector<8x1xf32> to vector<8x64xf32>
    %44 = arith.mulf %43, %42 : vector<8x64xf32>
    %45 = arith.addf %41, %44 : vector<8x64xf32>
    %46 = vector.extract_strided_slice %24 {offsets = [0, 640], sizes = [8, 64], strides = [1, 1]} : vector<8x1152xf32> to vector<8x64xf32>
    %47 = vector.broadcast %12 : vector<8x1xf32> to vector<8x64xf32>
    %48 = arith.mulf %47, %46 : vector<8x64xf32>
    %49 = arith.addf %45, %48 : vector<8x64xf32>
    %50 = vector.extract_strided_slice %24 {offsets = [0, 768], sizes = [8, 64], strides = [1, 1]} : vector<8x1152xf32> to vector<8x64xf32>
    %51 = vector.broadcast %13 : vector<8x1xf32> to vector<8x64xf32>
    %52 = arith.mulf %51, %50 : vector<8x64xf32>
    %53 = arith.addf %49, %52 : vector<8x64xf32>
    %54 = vector.extract_strided_slice %24 {offsets = [0, 896], sizes = [8, 64], strides = [1, 1]} : vector<8x1152xf32> to vector<8x64xf32>
    %55 = vector.broadcast %14 : vector<8x1xf32> to vector<8x64xf32>
    %56 = arith.mulf %55, %54 : vector<8x64xf32>
    %57 = arith.addf %53, %56 : vector<8x64xf32>
    %58 = vector.extract_strided_slice %24 {offsets = [0, 1024], sizes = [8, 64], strides = [1, 1]} : vector<8x1152xf32> to vector<8x64xf32>
    %59 = vector.broadcast %15 : vector<8x1xf32> to vector<8x64xf32>
    %60 = arith.mulf %59, %58 : vector<8x64xf32>
    %61 = arith.addf %57, %60 : vector<8x64xf32>
    %62 = vector.broadcast %4 : vector<8x1xf32> to vector<8x64xf32>
    %63 = arith.addf %61, %62 : vector<8x64xf32>
    %cst_19 = arith.constant dense<0.000000e+00> : vector<8x64xf32>
    %64 = tpu.matmul %5, %63, %cst_19 {dimension_numbers = #tpu.dot_dimension_numbers<[1], [0], [0], [1], [0, 0, 1, 1], [], []>} : vector<8x8xf32>, vector<8x64xf32>, vector<8x64xf32> -> vector<8x64xf32>
    %65 = vector.broadcast %6 : vector<8x1xf32> to vector<8x64xf32>
    %66 = arith.addf %64, %65 : vector<8x64xf32>
    %cst_20 = arith.constant 0.000000e+00 : f32
    %67 = vector.broadcast %cst_20 : f32 to vector<8x64xf32>
    %68 = arith.maximumf %66, %67 : vector<8x64xf32>
    %c0_21 = arith.constant 0 : index
    %c0_22 = arith.constant 0 : index
    %c0_23 = arith.constant 0 : index
    %69 = vector.load %arg9[%c0_21, %c0_22, %c0_23] : memref<1x8x64xf32, #tpu.memory_space<vmem>>, vector<1x8x64xf32>
    %70 = vector.shape_cast %69 : vector<1x8x64xf32> to vector<8x64xf32>
    %71 = vector.shape_cast %68 : vector<8x64xf32> to vector<1x8x64xf32>
    tpu.vector_store %arg9[%c0_21, %c0_22, %c0_23], %71 {strides = array<i32>} : memref<1x8x64xf32, #tpu.memory_space<vmem>>, vector<1x8x64xf32>,
    return
  }
  func.func @transform_0(%arg0: i32) -> (i32, i32, i32) {
    %c0_i32 = arith.constant 0 : i32
    %c0_i32_0 = arith.constant 0 : i32
    %c0_i32_1 = arith.constant 0 : i32
    return %arg0, %c0_i32, %c0_i32_0 : i32, i32, i32
  }
  func.func @transform_1(%arg0: i32) -> (i32, i32) {
    %c0_i32 = arith.constant 0 : i32
    %c0_i32_0 = arith.constant 0 : i32
    %c0_i32_1 = arith.constant 0 : i32
    return %c0_i32, %c0_i32_0 : i32, i32
  }
  func.func @transform_2(%arg0: i32) -> (i32, i32) {
    %c0_i32 = arith.constant 0 : i32
    %c0_i32_0 = arith.constant 0 : i32
    %c0_i32_1 = arith.constant 0 : i32
    return %c0_i32, %c0_i32_0 : i32, i32
  }
  func.func @transform_3(%arg0: i32) -> (i32, i32) {
    %c0_i32 = arith.constant 0 : i32
    %c0_i32_0 = arith.constant 0 : i32
    %c0_i32_1 = arith.constant 0 : i32
    return %c0_i32, %c0_i32_0 : i32, i32
  }
  func.func @transform_4(%arg0: i32) -> (i32, i32) {
    %c0_i32 = arith.constant 0 : i32
    %c0_i32_0 = arith.constant 0 : i32
    %c0_i32_1 = arith.constant 0 : i32
    return %c0_i32, %c0_i32_0 : i32, i32
  }
  func.func @transform_5(%arg0: i32) -> (i32, i32) {
    %c0_i32 = arith.constant 0 : i32
    %c0_i32_0 = arith.constant 0 : i32
    %c0_i32_1 = arith.constant 0 : i32
    return %c0_i32, %c0_i32_0 : i32, i32
  }
  func.func @transform_6(%arg0: i32) -> (i32, i32) {
    %c0_i32 = arith.constant 0 : i32
    %c0_i32_0 = arith.constant 0 : i32
    %c0_i32_1 = arith.constant 0 : i32
    return %c0_i32, %c0_i32_0 : i32, i32
  }
  func.func @transform_7(%arg0: i32) -> (i32, i32) {
    %c0_i32 = arith.constant 0 : i32
    %c0_i32_0 = arith.constant 0 : i32
    %c0_i32_1 = arith.constant 0 : i32
    return %c0_i32, %c0_i32_0 : i32, i32
  }
  func.func @transform_8(%arg0: i32) -> (i32, i32, i32) {
    %c0_i32 = arith.constant 0 : i32
    %c0_i32_0 = arith.constant 0 : i32
    %c0_i32_1 = arith.constant 0 : i32
    return %arg0, %c0_i32, %c0_i32_0 : i32, i32, i32
  }
}

</mosaic_0001>

<llo_original>
// kernel: tpu_custom_call.1
$region0: #{tpu_custom_call.1}
  #allocation0 [shape = 'u32[]', space=smem, size = 0x4, offset = 0x4, fixed_abs, tag = 'smem constant byte address 0x4 - core index']
  #allocation1 [shape = 'u32[144,128]{1,0:T(1,128)}', space=vmem, size = 0x12000, scoped, tag = 'internal scratch']
  %s0 = inlined_call_operand.hbm [shape: f32[2,4,256], index: 0, kind: input, shape index: {}]
  %s1 = inlined_call_operand.hbm [shape: f32[4,4], index: 1, kind: input, shape index: {}]
  %s2 = inlined_call_operand.vmem [shape: f32[4,1], index: 2, kind: input, shape index: {}]
  %s3 = inlined_call_operand.hbm [shape: f32[256,1152], index: 3, kind: input, shape index: {}]
  %s4 = inlined_call_operand.hbm [shape: f32[8,9], index: 4, kind: input, shape index: {}]
  %s5 = inlined_call_operand.vmem [shape: f32[8,1], index: 5, kind: input, shape index: {}]
  %s6 = inlined_call_operand.hbm [shape: f32[8,8], index: 6, kind: input, shape index: {}]
  %s7 = inlined_call_operand.vmem [shape: f32[8,1], index: 7, kind: input, shape index: {}]
  %s8 = inlined_call_operand.hbm [shape: f32[2,8,64], index: 8, kind: output, shape index: {}]
  %s9 = sld [smem:[#allocation0]]
  $region85: #{tpu_custom_call.1} parent=0
    _
  %s11 = ssub.s32 1, %s9
  %s12 = scalar_select 0, %s11, %s9
  $region1: #{tpu_custom_call.1} parent=0
    #allocation2 [shape = 'u8[8192]{0}', space=vmem, size = 0x2000, scoped, tag = 'input window, operand 0']
    #allocation3 [shape = 's32[2]{0}', space=sflag, size = 0x8, scoped, tag = 'scoped memory for tpu_custom_call.1']
    #allocation4 [shape = 's32[2]{0}', space=sflag, size = 0x8, scoped, tag = 'scoped memory for tpu_custom_call.1']
    #allocation5 [shape = 'u8[2048]{0}', space=vmem, size = 0x800, scoped, tag = 'input window, operand 1, single buffered']
    #allocation6 [shape = 's32[1]{0}', space=sflag, size = 0x4, scoped, tag = 'scoped memory for tpu_custom_call.1']
    #allocation7 [shape = 'u8[1179648]{0}', space=vmem, size = 0x120000, scoped, tag = 'input window, operand 3, single buffered']
    #allocation8 [shape = 'u8[4096]{0}', space=vmem, size = 0x1000, scoped, tag = 'input window, operand 4, single buffered']
    #allocation9 [shape = 's32[1]{0}', space=sflag, size = 0x4, scoped, tag = 'scoped memory for tpu_custom_call.1']
    #allocation10 [shape = 'u8[4096]{0}', space=vmem, size = 0x1000, scoped, tag = 'input window, operand 6, single buffered']
    #allocation11 [shape = 'u8[8192]{0}', space=vmem, size = 0x2000, scoped, tag = 'output window, operand 0']
    %13 = vsyncpa [#allocation3], 0
    %s14 = scalar_lea.sflag [#allocation3], 1
    %15 = vsyncpa %s14, 0
    %16 = vsyncpa [#allocation6], 0
    %17 = vsyncpa [#allocation9], 0
    %18 = vsyncpa [#allocation4], 0
    %s19 = scalar_lea.sflag [#allocation4], 1
    %20 = vsyncpa %s19, 0
    loop: start=0, step=1, limit=4
    $region2: #{tpu_custom_call.1} parent=1 // loop_pre_header
      _
    $region3: #{tpu_custom_call.1} parent=1 // loop_header
      %s22 = sphi 0, %s26
      %p23 = scmp.ge.s32.totalorder %s22, 4
      %s32 = sphi 0, %s34
      %s35 = sphi 0, %s32
      %s36 = sphi 0, %s35
      %s52 = sphi 0, %s36
      %s56 = sphi 0, %s56
      %s58 = sphi 0, %s56
      %s59 = sphi 0, %s58
      %s73 = sphi 0, %s59
      %s77 = sphi 0, %s77
      %s79 = sphi 0, %s77
      %s80 = sphi 0, %s79
      %s94 = sphi 0, %s80
      %s98 = sphi 0, %s98
      %s100 = sphi 0, %s98
      %s101 = sphi 0, %s100
      %s115 = sphi 0, %s101
      %s119 = sphi 0, %s119
      %s121 = sphi 0, %s119
      %s122 = sphi 0, %s121
      %s136 = sphi 0, %s122
      %s140 = sphi 0, %s140
      %s142 = sphi 0, %s140
      %s143 = sphi 0, %s142
      %s157 = sphi 0, %s143
      %s161 = sphi 0, %s161
      %s163 = sphi 0, %s161
      %s164 = sphi 0, %s163
      %s178 = sphi 0, %s164
      %s182 = sphi 0, %s182
      %s184 = sphi 0, %s182
      %s185 = sphi 0, %s184
      %s199 = sphi 0, %s185
      %s205 = sphi 0, %s207
      %s208 = sphi 0, %s205
      %s209 = sphi 0, %s208
      %s225 = sphi 0, %s209
    $region4: #{tpu_custom_call.1} parent=1 // loop_header_branch
      %25 = sbr.rel (%p23) target = $region8
    $region5: #{tpu_custom_call.1} parent=1 // loop_body
      %s27 = ssub.s32 %s22, 1
      %s28 = ssub.s32 %s22, 2
      %s29 = sadd.s32 %s22, 1
      %s30 = ssub.s32 %s22, %s29
      %p31 = scmp.eq.s32.totalorder %s30, 0
      %s33 = sadd.s32 %s32, 1
      %s34 = scalar_select %p31, %s32, %s33
      %p37 = pneg %p31
      %p38 = scmp.eq.s32.totalorder %s22, 1
      %p39 = por %p37, %p38
      %p40 = scmp.ne.s32.totalorder %s32, %s35
      %p41 = scmp.eq.s32.totalorder %s22, 0
      %p42 = por %p40, %p41
      %p43 = scmp.ne.s32.totalorder %s32, %s35
      %p44 = scmp.eq.s32.totalorder %s27, 1
      %p45 = por %p43, %p44
      %p46 = scmp.ne.s32.totalorder %s35, %s36
      %p47 = scmp.eq.s32.totalorder %s27, 0
      %p48 = por %p46, %p47
      %p49 = scmp.ne.s32.totalorder %s35, %s36
      %p50 = scmp.eq.s32.totalorder %s28, 1
      %p51 = por %p49, %p50
      %p53 = scmp.ne.s32.totalorder %s36, %s52
      %p54 = scmp.eq.s32.totalorder %s28, 0
      %p55 = por %p53, %p54
      %s57 = sadd.s32 %s56, 1
      %p60 = scmp.eq.s32.totalorder %s22, 1
      %p61 = scmp.ne.s32.totalorder %s56, %s58
      %p62 = scmp.eq.s32.totalorder %s22, 0
      %p63 = por %p61, %p62
      %p64 = scmp.ne.s32.totalorder %s56, %s58
      %p65 = scmp.eq.s32.totalorder %s27, 1
      %p66 = por %p64, %p65
      %p67 = scmp.ne.s32.totalorder %s58, %s59
      %p68 = scmp.eq.s32.totalorder %s27, 0
      %p69 = por %p67, %p68
      %p70 = scmp.ne.s32.totalorder %s58, %s59
      %p71 = scmp.eq.s32.totalorder %s28, 1
      %p72 = por %p70, %p71
      %p74 = scmp.ne.s32.totalorder %s59, %s73
      %p75 = scmp.eq.s32.totalorder %s28, 0
      %p76 = por %p74, %p75
      %s78 = sadd.s32 %s77, 1
      %p81 = scmp.eq.s32.totalorder %s22, 1
      %p82 = scmp.ne.s32.totalorder %s77, %s79
      %p83 = scmp.eq.s32.totalorder %s22, 0
      %p84 = por %p82, %p83
      %p85 = scmp.ne.s32.totalorder %s77, %s79
      %p86 = scmp.eq.s32.totalorder %s27, 1
      %p87 = por %p85, %p86
      %p88 = scmp.ne.s32.totalorder %s79, %s80
      %p89 = scmp.eq.s32.totalorder %s27, 0
      %p90 = por %p88, %p89
      %p91 = scmp.ne.s32.totalorder %s79, %s80
      %p92 = scmp.eq.s32.totalorder %s28, 1
      %p93 = por %p91, %p92
      %p95 = scmp.ne.s32.totalorder %s80, %s94
      %p96 = scmp.eq.s32.totalorder %s28, 0
      %p97 = por %p95, %p96
      %s99 = sadd.s32 %s98, 1
      %p102 = scmp.eq.s32.totalorder %s22, 1
      %p103 = scmp.ne.s32.totalorder %s98, %s100
      %p104 = scmp.eq.s32.totalorder %s22, 0
      %p105 = por %p103, %p104
      %p106 = scmp.ne.s32.totalorder %s98, %s100
      %p107 = scmp.eq.s32.totalorder %s27, 1
      %p108 = por %p106, %p107
      %p109 = scmp.ne.s32.totalorder %s100, %s101
      %p110 = scmp.eq.s32.totalorder %s27, 0
      %p111 = por %p109, %p110
      %p112 = scmp.ne.s32.totalorder %s100, %s101
      %p113 = scmp.eq.s32.totalorder %s28, 1
      %p114 = por %p112, %p113
      %p116 = scmp.ne.s32.totalorder %s101, %s115
      %p117 = scmp.eq.s32.totalorder %s28, 0
      %p118 = por %p116, %p117
      %s120 = sadd.s32 %s119, 1
      %p123 = scmp.eq.s32.totalorder %s22, 1
      %p124 = scmp.ne.s32.totalorder %s119, %s121
      %p125 = scmp.eq.s32.totalorder %s22, 0
      %p126 = por %p124, %p125
      %p127 = scmp.ne.s32.totalorder %s119, %s121
      %p128 = scmp.eq.s32.totalorder %s27, 1
      %p129 = por %p127, %p128
      %p130 = scmp.ne.s32.totalorder %s121, %s122
      %p131 = scmp.eq.s32.totalorder %s27, 0
      %p132 = por %p130, %p131
      %p133 = scmp.ne.s32.totalorder %s121, %s122
      %p134 = scmp.eq.s32.totalorder %s28, 1
      %p135 = por %p133, %p134
      %p137 = scmp.ne.s32.totalorder %s122, %s136
      %p138 = scmp.eq.s32.totalorder %s28, 0
      %p139 = por %p137, %p138
      %s141 = sadd.s32 %s140, 1
      %p144 = scmp.eq.s32.totalorder %s22, 1
      %p145 = scmp.ne.s32.totalorder %s140, %s142
      %p146 = scmp.eq.s32.totalorder %s22, 0
      %p147 = por %p145, %p146
      %p148 = scmp.ne.s32.totalorder %s140, %s142
      %p149 = scmp.eq.s32.totalorder %s27, 1
      %p150 = por %p148, %p149
      %p151 = scmp.ne.s32.totalorder %s142, %s143
      %p152 = scmp.eq.s32.totalorder %s27, 0
      %p153 = por %p151, %p152
      %p154 = scmp.ne.s32.totalorder %s142, %s143
      %p155 = scmp.eq.s32.totalorder %s28, 1
      %p156 = por %p154, %p155
      %p158 = scmp.ne.s32.totalorder %s143, %s157
      %p159 = scmp.eq.s32.totalorder %s28, 0
      %p160 = por %p158, %p159
      %s162 = sadd.s32 %s161, 1
      %p165 = scmp.eq.s32.totalorder %s22, 1
      %p166 = scmp.ne.s32.totalorder %s161, %s163
      %p167 = scmp.eq.s32.totalorder %s22, 0
      %p168 = por %p166, %p167
      %p169 = scmp.ne.s32.totalorder %s161, %s163
      %p170 = scmp.eq.s32.totalorder %s27, 1
      %p171 = por %p169, %p170
      %p172 = scmp.ne.s32.totalorder %s163, %s164
      %p173 = scmp.eq.s32.totalorder %s27, 0
      %p174 = por %p172, %p173
      %p175 = scmp.ne.s32.totalorder %s163, %s164
      %p176 = scmp.eq.s32.totalorder %s28, 1
      %p177 = por %p175, %p176
      %p179 = scmp.ne.s32.totalorder %s164, %s178
      %p180 = scmp.eq.s32.totalorder %s28, 0
      %p181 = por %p179, %p180
      %s183 = sadd.s32 %s182, 1
      %p186 = scmp.eq.s32.totalorder %s22, 1
      %p187 = scmp.ne.s32.totalorder %s182, %s184
      %p188 = scmp.eq.s32.totalorder %s22, 0
      %p189 = por %p187, %p188
      %p190 = scmp.ne.s32.totalorder %s182, %s184
      %p191 = scmp.eq.s32.totalorder %s27, 1
      %p192 = por %p190, %p191
      %p193 = scmp.ne.s32.totalorder %s184, %s185
      %p194 = scmp.eq.s32.totalorder %s27, 0
      %p195 = por %p193, %p194
      %p196 = scmp.ne.s32.totalorder %s184, %s185
      %p197 = scmp.eq.s32.totalorder %s28, 1
      %p198 = por %p196, %p197
      %p200 = scmp.ne.s32.totalorder %s185, %s199
      %p201 = scmp.eq.s32.totalorder %s28, 0
      %p202 = por %p200, %p201
      %s203 = ssub.s32 %s22, %s29
      %p204 = scmp.eq.s32.totalorder %s203, 0
      %s206 = sadd.s32 %s205, 1
      %s207 = scalar_select %p204, %s205, %s206
      %p210 = pneg %p204
      %p211 = scmp.eq.s32.totalorder %s22, 1
      %p212 = por %p210, %p211
      %p213 = scmp.ne.s32.totalorder %s205, %s208
      %p214 = scmp.eq.s32.totalorder %s22, 0
      %p215 = por %p213, %p214
      %p216 = scmp.ne.s32.totalorder %s205, %s208
      %p217 = scmp.eq.s32.totalorder %s27, 1
      %p218 = por %p216, %p217
      %p219 = scmp.ne.s32.totalorder %s208, %s209
      %p220 = scmp.eq.s32.totalorder %s27, 0
      %p221 = por %p219, %p220
      %p222 = scmp.ne.s32.totalorder %s208, %s209
      %p223 = scmp.eq.s32.totalorder %s28, 1
      %p224 = por %p222, %p223
      %p226 = scmp.ne.s32.totalorder %s209, %s225
      %p227 = scmp.eq.s32.totalorder %s28, 0
      %p228 = por %p226, %p227
      %p229 = scmp.le.s32.totalorder 1, %s22
      %p230 = scmp.lt.s32.totalorder %s22, 3
      %p231 = pnand %p229, %p230
      %p232 = pneg %p231
      // Predicated region
      $region9: #{tpu_custom_call.1} parent=5 // pred_check
        _
      $region10: #{tpu_custom_call.1} parent=5 // pred_check_branch
        %234 = sbr.rel (%p231) target = $region12
      $region11: #{tpu_custom_call.1} parent=5 // pred_region
        %s235 = ssub.s32 %s22, 1
        // Predicated region
        $region13: #{tpu_custom_call.1} parent=11 // pred_check
          %p236 = pneg %p69
        $region14: #{tpu_custom_call.1} parent=11 // pred_check_branch
          %238 = sbr.rel (%p236) target = $region16
        $region15: #{tpu_custom_call.1} parent=11 // pred_region
          %s240 = ssub.s32 64, 64
          %241 = vsyncadd [#allocation6], %s240
          %s243 = sshll.u32 [#allocation5], 4
          %s244 = int_to_ptr.vmem [resolvable:$true] %s243
          %246 = dma.hbm_to_vmem [thread:$0]  %s1, 64, %s244, [#allocation6]
        $region16: #{tpu_custom_call.1} parent=11 // pred_fallthru
          _
        // Predicated region
        $region17: #{tpu_custom_call.1} parent=11 // pred_check
          %p247 = pneg %p90
        $region18: #{tpu_custom_call.1} parent=11 // pred_check_branch
          %249 = sbr.rel (%p247) target = $region20
        $region19: #{tpu_custom_call.1} parent=11 // pred_region
          _
        $region20: #{tpu_custom_call.1} parent=11 // pred_fallthru
          _
        // Predicated region
        $region21: #{tpu_custom_call.1} parent=11 // pred_check
          %p250 = pneg %p111
        $region22: #{tpu_custom_call.1} parent=11 // pred_check_branch
          %252 = sbr.rel (%p250) target = $region24
        $region23: #{tpu_custom_call.1} parent=11 // pred_region
          %s254 = ssub.s32 36864, 36864
          %255 = vsyncadd [#allocation6], %s254
          %s256 = sshll.u32 [#allocation7], 4
          %s257 = int_to_ptr.vmem [resolvable:$true] %s256
          %262 = dma.hbm_to_vmem [thread:$0]  %s3, 36864, %s257, [#allocation6], 1152, 1152, 72
        $region24: #{tpu_custom_call.1} parent=11 // pred_fallthru
          _
        // Predicated region
        $region25: #{tpu_custom_call.1} parent=11 // pred_check
          %p263 = pneg %p132
        $region26: #{tpu_custom_call.1} parent=11 // pred_check_branch
          %265 = sbr.rel (%p263) target = $region28
        $region27: #{tpu_custom_call.1} parent=11 // pred_region
          %s267 = ssub.s32 128, 128
          %268 = vsyncadd [#allocation9], %s267
          %s270 = sshll.u32 [#allocation8], 4
          %s271 = int_to_ptr.vmem [resolvable:$true] %s270
          %273 = dma.hbm_to_vmem [thread:$0]  %s4, 128, %s271, [#allocation9]
        $region28: #{tpu_custom_call.1} parent=11 // pred_fallthru
          _
        // Predicated region
        $region29: #{tpu_custom_call.1} parent=11 // pred_check
          %p274 = pneg %p153
        $region30: #{tpu_custom_call.1} parent=11 // pred_check_branch
          %276 = sbr.rel (%p274) target = $region32
        $region31: #{tpu_custom_call.1} parent=11 // pred_region
          _
        $region32: #{tpu_custom_call.1} parent=11 // pred_fallthru
          _
        // Predicated region
        $region33: #{tpu_custom_call.1} parent=11 // pred_check
          %p277 = pneg %p174
        $region34: #{tpu_custom_call.1} parent=11 // pred_check_branch
          %279 = sbr.rel (%p277) target = $region36
        $region35: #{tpu_custom_call.1} parent=11 // pred_region
          %s281 = ssub.s32 128, 128
          %282 = vsyncadd [#allocation9], %s281
          %s284 = sshll.u32 [#allocation10], 4
          %s285 = int_to_ptr.vmem [resolvable:$true] %s284
          %287 = dma.hbm_to_vmem [thread:$0]  %s6, 128, %s285, [#allocation9]
        $region36: #{tpu_custom_call.1} parent=11 // pred_fallthru
          _
        // Predicated region
        $region37: #{tpu_custom_call.1} parent=11 // pred_check
          %p288 = pneg %p195
        $region38: #{tpu_custom_call.1} parent=11 // pred_check_branch
          %290 = sbr.rel (%p288) target = $region40
        $region39: #{tpu_custom_call.1} parent=11 // pred_region
          _
        $region40: #{tpu_custom_call.1} parent=11 // pred_fallthru
          _
      $region12: #{tpu_custom_call.1} parent=5 // pred_fallthru
        _
      %p291 = scmp.lt.s32.totalorder %s22, 2
      // Predicated region
      $region41: #{tpu_custom_call.1} parent=5 // pred_check
        %p292 = pneg %p291
      $region42: #{tpu_custom_call.1} parent=5 // pred_check_branch
        %294 = sbr.rel (%p292) target = $region44
      $region43: #{tpu_custom_call.1} parent=5 // pred_region
        // Predicated region
        $region45: #{tpu_custom_call.1} parent=43 // pred_check
          %p295 = pneg %p42
        $region46: #{tpu_custom_call.1} parent=43 // pred_check_branch
          %297 = sbr.rel (%p295) target = $region48
        $region47: #{tpu_custom_call.1} parent=43 // pred_region
          %s298 = sand.u32 %s32, 1
          %s299 = scalar_lea.sflag [#allocation3], %s298
          %s300 = sand.u32 %s32, 1
          %s301 = smul.addr %s300, 8
          %s302 = scalar_lea.vmem [#allocation2], %s301
          %s304 = ssub.s32 128, 128
          %305 = vsyncadd %s299, %s304
          %s306 = smul.addr %s22, 2
          %s307 = smul.addr %s306, 64
          %s308 = scalar_lea.hbm %s0, %s307
          %s310 = sshll.u32 %s302, 4
          %s311 = int_to_ptr.vmem [resolvable:$true] %s310
          %313 = dma.hbm_to_vmem [thread:$0]  %s308, 128, %s311, %s299
        $region48: #{tpu_custom_call.1} parent=43 // pred_fallthru
          _
      $region44: #{tpu_custom_call.1} parent=5 // pred_fallthru
        _
      %p314 = scmp.le.s32.totalorder 1, %s22
      %p315 = scmp.lt.s32.totalorder %s22, 3
      %p316 = pnand %p314, %p315
      %p317 = pneg %p316
      // Predicated region
      $region49: #{tpu_custom_call.1} parent=5 // pred_check
        _
      $region50: #{tpu_custom_call.1} parent=5 // pred_check_branch
        %319 = sbr.rel (%p316) target = $region52
      $region51: #{tpu_custom_call.1} parent=5 // pred_region
        %s320 = ssub.s32 %s22, 1
        %s321 = sand.u32 %s35, 1
        %s322 = scalar_lea.sflag [#allocation3], %s321
        %s323 = sand.u32 %s35, 1
        %s324 = smul.addr %s323, 8
        %s325 = scalar_lea.vmem [#allocation2], %s324
        // Predicated region
        $region53: #{tpu_custom_call.1} parent=51 // pred_check
          %p326 = pneg %p48
        $region54: #{tpu_custom_call.1} parent=51 // pred_check_branch
          %328 = sbr.rel (%p326) target = $region56
        $region55: #{tpu_custom_call.1} parent=51 // pred_region
          %329 = dma.done %s322, 128
        $region56: #{tpu_custom_call.1} parent=51 // pred_fallthru
          _
        // Predicated region
        $region57: #{tpu_custom_call.1} parent=51 // pred_check
          %p330 = pneg %p69
        $region58: #{tpu_custom_call.1} parent=51 // pred_check_branch
          %332 = sbr.rel (%p330) target = $region60
        $region59: #{tpu_custom_call.1} parent=51 // pred_region
          %333 = dma.done [#allocation6], 64
        $region60: #{tpu_custom_call.1} parent=51 // pred_fallthru
          _
        // Predicated region
        $region61: #{tpu_custom_call.1} parent=51 // pred_check
          %p334 = pneg %p111
        $region62: #{tpu_custom_call.1} parent=51 // pred_check_branch
          %336 = sbr.rel (%p334) target = $region64
        $region63: #{tpu_custom_call.1} parent=51 // pred_region
          %337 = dma.done [#allocation6], 36864
        $region64: #{tpu_custom_call.1} parent=51 // pred_fallthru
          _
        // Predicated region
        $region65: #{tpu_custom_call.1} parent=51 // pred_check
          %p338 = pneg %p132
        $region66: #{tpu_custom_call.1} parent=51 // pred_check_branch
          %340 = sbr.rel (%p338) target = $region68
        $region67: #{tpu_custom_call.1} parent=51 // pred_region
          %341 = dma.done [#allocation9], 128
        $region68: #{tpu_custom_call.1} parent=51 // pred_fallthru
          _
        // Predicated region
        $region69: #{tpu_custom_call.1} parent=51 // pred_check
          %p342 = pneg %p174
        $region70: #{tpu_custom_call.1} parent=51 // pred_check_branch
          %344 = sbr.rel (%p342) target = $region72
        $region71: #{tpu_custom_call.1} parent=51 // pred_region
          %345 = dma.done [#allocation9], 128
        $region72: #{tpu_custom_call.1} parent=51 // pred_fallthru
          _
        %s346 = sand.u32 %s35, 1
        %s347 = scalar_lea.sflag [#allocation3], %s346
        %s348 = sand.u32 %s35, 1
        %s349 = smul.addr %s348, 8
        %s350 = scalar_lea.vmem [#allocation2], %s349
        %p351 = pneg %p48
        %p352 = pneg %p45
        %p353 = pneg %p69
        %p354 = pneg %p66
        %p355 = pneg %p90
        %p356 = pneg %p87
        %p357 = pneg %p111
        %p358 = pneg %p108
        %p359 = pneg %p132
        %p360 = pneg %p129
        %p361 = pneg %p153
        %p362 = pneg %p150
        %p363 = pneg %p174
        %p364 = pneg %p171
        %p365 = pneg %p195
        %p366 = pneg %p192
        %p367 = pneg %p221
        %p368 = pneg %p218
        %s369 = sand.u32 %s208, 1
        %s370 = scalar_lea.sflag [#allocation4], %s369
        %s371 = sand.u32 %s208, 1
        %s372 = smul.addr %s371, 8
        %s373 = scalar_lea.vmem [#allocation11], %s372
        %v374 = vld [vmem:[#allocation5] sm:$0xf]
        %v375 = vld [vmem:[%s2] sm:$0xf]
        %v376 = vld [vmem:[#allocation7] sm:$0xff]
        %v377 = vld [vmem:[#allocation7 + $0x8] sm:$0xff]
        %v378 = vld [vmem:[#allocation7 + $0x10] sm:$0xff]
        %v379 = vld [vmem:[#allocation7 + $0x18] sm:$0xff]
        %v380 = vld [vmem:[#allocation7 + $0x20] sm:$0xff]
        %v381 = vld [vmem:[#allocation7 + $0x28] sm:$0xff]
        %v382 = vld [vmem:[#allocation7 + $0x30] sm:$0xff]
        %v383 = vld [vmem:[#allocation7 + $0x38] sm:$0xff]
        %v384 = vld [vmem:[#allocation7 + $0x40] sm:$0xff]
        %v385 = vld [vmem:[#allocation7 + $0x48] sm:$0xff]
        %v386 = vld [vmem:[#allocation7 + $0x50] sm:$0xff]
        %v387 = vld [vmem:[#allocation7 + $0x58] sm:$0xff]
        %v388 = vld [vmem:[#allocation7 + $0x60] sm:$0xff]
        %v389 = vld [vmem:[#allocation7 + $0x68] sm:$0xff]
        %v390 = vld [vmem:[#allocation7 + $0x70] sm:$0xff]
        %v391 = vld [vmem:[#allocation7 + $0x78] sm:$0xff]
        %v392 = vld [vmem:[#allocation7 + $0x80] sm:$0xff]
        %v393 = vld [vmem:[#allocation7 + $0x88] sm:$0xff]
        %v394 = vld [vmem:[#allocation7 + $0x90] sm:$0xff]
        %v395 = vld [vmem:[#allocation7 + $0x98] sm:$0xff]
        %v396 = vld [vmem:[#allocation7 + $0xa0] sm:$0xff]
        %v397 = vld [vmem:[#allocation7 + $0xa8] sm:$0xff]
        %v398 = vld [vmem:[#allocation7 + $0xb0] sm:$0xff]
        %v399 = vld [vmem:[#allocation7 + $0xb8] sm:$0xff]
        %v400 = vld [vmem:[#allocation7 + $0xc0] sm:$0xff]
        %v401 = vld [vmem:[#allocation7 + $0xc8] sm:$0xff]
        %v402 = vld [vmem:[#allocation7 + $0xd0] sm:$0xff]
        %v403 = vld [vmem:[#allocation7 + $0xd8] sm:$0xff]
        %v404 = vld [vmem:[#allocation7 + $0xe0] sm:$0xff]
        %v405 = vld [vmem:[#allocation7 + $0xe8] sm:$0xff]
        %v406 = vld [vmem:[#allocation7 + $0xf0] sm:$0xff]
        %v407 = vld [vmem:[#allocation7 + $0xf8] sm:$0xff]
        %v408 = vld [vmem:[#allocation7 + $0x100] sm:$0xff]
        %v409 = vld [vmem:[#allocation7 + $0x108] sm:$0xff]
        %v410 = vld [vmem:[#allocation7 + $0x110] sm:$0xff]
        %v411 = vld [vmem:[#allocation7 + $0x118] sm:$0xff]
        %v412 = vld [vmem:[#allocation7 + $0x120] sm:$0xff]
        %v413 = vld [vmem:[#allocation7 + $0x128] sm:$0xff]
        %v414 = vld [vmem:[#allocation7 + $0x130] sm:$0xff]
        %v415 = vld [vmem:[#allocation7 + $0x138] sm:$0xff]
        %v416 = vld [vmem:[#allocation7 + $0x140] sm:$0xff]
        %v417 = vld [vmem:[#allocation7 + $0x148] sm:$0xff]
        %v418 = vld [vmem:[#allocation7 + $0x150] sm:$0xff]
        %v419 = vld [vmem:[#allocation7 + $0x158] sm:$0xff]
        %v420 = vld [vmem:[#allocation7 + $0x160] sm:$0xff]
        %v421 = vld [vmem:[#allocation7 + $0x168] sm:$0xff]
        %v422 = vld [vmem:[#allocation7 + $0x170] sm:$0xff]
        %v423 = vld [vmem:[#allocation7 + $0x178] sm:$0xff]
        %v424 = vld [vmem:[#allocation7 + $0x180] sm:$0xff]
        %v425 = vld [vmem:[#allocation7 + $0x188] sm:$0xff]
        %v426 = vld [vmem:[#allocation7 + $0x190] sm:$0xff]
        %v427 = vld [vmem:[#allocation7 + $0x198] sm:$0xff]
        %v428 = vld [vmem:[#allocation7 + $0x1a0] sm:$0xff]
        %v429 = vld [vmem:[#allocation7 + $0x1a8] sm:$0xff]
        %v430 = vld [vmem:[#allocation7 + $0x1b0] sm:$0xff]
        %v431 = vld [vmem:[#allocation7 + $0x1b8] sm:$0xff]
        %v432 = vld [vmem:[#allocation7 + $0x1c0] sm:$0xff]
        %v433 = vld [vmem:[#allocation7 + $0x1c8] sm:$0xff]
        %v434 = vld [vmem:[#allocation7 + $0x1d0] sm:$0xff]
        %v435 = vld [vmem:[#allocation7 + $0x1d8] sm:$0xff]
        %v436 = vld [vmem:[#allocation7 + $0x1e0] sm:$0xff]
        %v437 = vld [vmem:[#allocation7 + $0x1e8] sm:$0xff]
        %v438 = vld [vmem:[#allocation7 + $0x1f0] sm:$0xff]
        %v439 = vld [vmem:[#allocation7 + $0x1f8] sm:$0xff]
        %v440 = vld [vmem:[#allocation7 + $0x200] sm:$0xff]
        %v441 = vld [vmem:[#allocation7 + $0x208] sm:$0xff]
        %v442 = vld [vmem:[#allocation7 + $0x210] sm:$0xff]
        %v443 = vld [vmem:[#allocation7 + $0x218] sm:$0xff]
        %v444 = vld [vmem:[#allocation7 + $0x220] sm:$0xff]
        %v445 = vld [vmem:[#allocation7 + $0x228] sm:$0xff]
        %v446 = vld [vmem:[#allocation7 + $0x230] sm:$0xff]
        %v447 = vld [vmem:[#allocation7 + $0x238] sm:$0xff]
        %v448 = vld [vmem:[#allocation7 + $0x240] sm:$0xff]
        %v449 = vld [vmem:[#allocation7 + $0x248] sm:$0xff]
        %v450 = vld [vmem:[#allocation7 + $0x250] sm:$0xff]
        %v451 = vld [vmem:[#allocation7 + $0x258] sm:$0xff]
        %v452 = vld [vmem:[#allocation7 + $0x260] sm:$0xff]
        %v453 = vld [vmem:[#allocation7 + $0x268] sm:$0xff]
        %v454 = vld [vmem:[#allocation7 + $0x270] sm:$0xff]
        %v455 = vld [vmem:[#allocation7 + $0x278] sm:$0xff]
        %v456 = vld [vmem:[#allocation7 + $0x280] sm:$0xff]
        %v457 = vld [vmem:[#allocation7 + $0x288] sm:$0xff]
        %v458 = vld [vmem:[#allocation7 + $0x290] sm:$0xff]
        %v459 = vld [vmem:[#allocation7 + $0x298] sm:$0xff]
        %v460 = vld [vmem:[#allocation7 + $0x2a0] sm:$0xff]
        %v461 = vld [vmem:[#allocation7 + $0x2a8] sm:$0xff]
        %v462 = vld [vmem:[#allocation7 + $0x2b0] sm:$0xff]
        %v463 = vld [vmem:[#allocation7 + $0x2b8] sm:$0xff]
        %v464 = vld [vmem:[#allocation7 + $0x2c0] sm:$0xff]
        %v465 = vld [vmem:[#allocation7 + $0x2c8] sm:$0xff]
        %v466 = vld [vmem:[#allocation7 + $0x2d0] sm:$0xff]
        %v467 = vld [vmem:[#allocation7 + $0x2d8] sm:$0xff]
        %v468 = vld [vmem:[#allocation7 + $0x2e0] sm:$0xff]
        %v469 = vld [vmem:[#allocation7 + $0x2e8] sm:$0xff]
        %v470 = vld [vmem:[#allocation7 + $0x2f0] sm:$0xff]
        %v471 = vld [vmem:[#allocation7 + $0x2f8] sm:$0xff]
        %v472 = vld [vmem:[#allocation7 + $0x300] sm:$0xff]
        %v473 = vld [vmem:[#allocation7 + $0x308] sm:$0xff]
        %v474 = vld [vmem:[#allocation7 + $0x310] sm:$0xff]
        %v475 = vld [vmem:[#allocation7 + $0x318] sm:$0xff]
        %v476 = vld [vmem:[#allocation7 + $0x320] sm:$0xff]
        %v477 = vld [vmem:[#allocation7 + $0x328] sm:$0xff]
        %v478 = vld [vmem:[#allocation7 + $0x330] sm:$0xff]
        %v479 = vld [vmem:[#allocation7 + $0x338] sm:$0xff]
        %v480 = vld [vmem:[#allocation7 + $0x340] sm:$0xff]
        %v481 = vld [vmem:[#allocation7 + $0x348] sm:$0xff]
        %v482 = vld [vmem:[#allocation7 + $0x350] sm:$0xff]
        %v483 = vld [vmem:[#allocation7 + $0x358] sm:$0xff]
        %v484 = vld [vmem:[#allocation7 + $0x360] sm:$0xff]
        %v485 = vld [vmem:[#allocation7 + $0x368] sm:$0xff]
        %v486 = vld [vmem:[#allocation7 + $0x370] sm:$0xff]
        %v487 = vld [vmem:[#allocation7 + $0x378] sm:$0xff]
        %v488 = vld [vmem:[#allocation7 + $0x380] sm:$0xff]
        %v489 = vld [vmem:[#allocation7 + $0x388] sm:$0xff]
        %v490 = vld [vmem:[#allocation7 + $0x390] sm:$0xff]
        %v491 = vld [vmem:[#allocation7 + $0x398] sm:$0xff]
        %v492 = vld [vmem:[#allocation7 + $0x3a0] sm:$0xff]
        %v493 = vld [vmem:[#allocation7 + $0x3a8] sm:$0xff]
        %v494 = vld [vmem:[#allocation7 + $0x3b0] sm:$0xff]
        %v495 = vld [vmem:[#allocation7 + $0x3b8] sm:$0xff]
        %v496 = vld [vmem:[#allocation7 + $0x3c0] sm:$0xff]
        %v497 = vld [vmem:[#allocation7 + $0x3c8] sm:$0xff]
        %v498 = vld [vmem:[#allocation7 + $0x3d0] sm:$0xff]
        %v499 = vld [vmem:[#allocation7 + $0x3d8] sm:$0xff]
        %v500 = vld [vmem:[#allocation7 + $0x3e0] sm:$0xff]
        %v501 = vld [vmem:[#allocation7 + $0x3e8] sm:$0xff]
        %v502 = vld [vmem:[#allocation7 + $0x3f0] sm:$0xff]
        %v503 = vld [vmem:[#allocation7 + $0x3f8] sm:$0xff]
        %v504 = vld [vmem:[#allocation7 + $0x400] sm:$0xff]
        %v505 = vld [vmem:[#allocation7 + $0x408] sm:$0xff]
        %v506 = vld [vmem:[#allocation7 + $0x410] sm:$0xff]
        %v507 = vld [vmem:[#allocation7 + $0x418] sm:$0xff]
        %v508 = vld [vmem:[#allocation7 + $0x420] sm:$0xff]
        %v509 = vld [vmem:[#allocation7 + $0x428] sm:$0xff]
        %v510 = vld [vmem:[#allocation7 + $0x430] sm:$0xff]
        %v511 = vld [vmem:[#allocation7 + $0x438] sm:$0xff]
        %v512 = vld [vmem:[#allocation7 + $0x440] sm:$0xff]
        %v513 = vld [vmem:[#allocation7 + $0x448] sm:$0xff]
        %v514 = vld [vmem:[#allocation7 + $0x450] sm:$0xff]
        %v515 = vld [vmem:[#allocation7 + $0x458] sm:$0xff]
        %v516 = vld [vmem:[#allocation7 + $0x460] sm:$0xff]
        %v517 = vld [vmem:[#allocation7 + $0x468] sm:$0xff]
        %v518 = vld [vmem:[#allocation7 + $0x470] sm:$0xff]
        %v519 = vld [vmem:[#allocation7 + $0x478] sm:$0xff]
        %v520 = vld [vmem:[#allocation7 + $0x480] sm:$0xff]
        %v521 = vld [vmem:[#allocation7 + $0x488] sm:$0xff]
        %v522 = vld [vmem:[#allocation7 + $0x490] sm:$0xff]
        %v523 = vld [vmem:[#allocation7 + $0x498] sm:$0xff]
        %v524 = vld [vmem:[#allocation7 + $0x4a0] sm:$0xff]
        %v525 = vld [vmem:[#allocation7 + $0x4a8] sm:$0xff]
        %v526 = vld [vmem:[#allocation7 + $0x4b0] sm:$0xff]
        %v527 = vld [vmem:[#allocation7 + $0x4b8] sm:$0xff]
        %v528 = vld [vmem:[#allocation7 + $0x4c0] sm:$0xff]
        %v529 = vld [vmem:[#allocation7 + $0x4c8] sm:$0xff]
        %v530 = vld [vmem:[#allocation7 + $0x4d0] sm:$0xff]
        %v531 = vld [vmem:[#allocation7 + $0x4d8] sm:$0xff]
        %v532 = vld [vmem:[#allocation7 + $0x4e0] sm:$0xff]
        %v533 = vld [vmem:[#allocation7 + $0x4e8] sm:$0xff]
        %v534 = vld [vmem:[#allocation7 + $0x4f0] sm:$0xff]
        %v535 = vld [vmem:[#allocation7 + $0x4f8] sm:$0xff]
        %v536 = vld [vmem:[#allocation7 + $0x500] sm:$0xff]
        %v537 = vld [vmem:[#allocation7 + $0x508] sm:$0xff]
        %v538 = vld [vmem:[#allocation7 + $0x510] sm:$0xff]
        %v539 = vld [vmem:[#allocation7 + $0x518] sm:$0xff]
        %v540 = vld [vmem:[#allocation7 + $0x520] sm:$0xff]
        %v541 = vld [vmem:[#allocation7 + $0x528] sm:$0xff]
        %v542 = vld [vmem:[#allocation7 + $0x530] sm:$0xff]
        %v543 = vld [vmem:[#allocation7 + $0x538] sm:$0xff]
        %v544 = vld [vmem:[#allocation7 + $0x540] sm:$0xff]
        %v545 = vld [vmem:[#allocation7 + $0x548] sm:$0xff]
        %v546 = vld [vmem:[#allocation7 + $0x550] sm:$0xff]
        %v547 = vld [vmem:[#allocation7 + $0x558] sm:$0xff]
        %v548 = vld [vmem:[#allocation7 + $0x560] sm:$0xff]
        %v549 = vld [vmem:[#allocation7 + $0x568] sm:$0xff]
        %v550 = vld [vmem:[#allocation7 + $0x570] sm:$0xff]
        %v551 = vld [vmem:[#allocation7 + $0x578] sm:$0xff]
        %v552 = vld [vmem:[#allocation7 + $0x580] sm:$0xff]
        %v553 = vld [vmem:[#allocation7 + $0x588] sm:$0xff]
        %v554 = vld [vmem:[#allocation7 + $0x590] sm:$0xff]
        %v555 = vld [vmem:[#allocation7 + $0x598] sm:$0xff]
        %v556 = vld [vmem:[#allocation7 + $0x5a0] sm:$0xff]
        %v557 = vld [vmem:[#allocation7 + $0x5a8] sm:$0xff]
        %v558 = vld [vmem:[#allocation7 + $0x5b0] sm:$0xff]
        %v559 = vld [vmem:[#allocation7 + $0x5b8] sm:$0xff]
        %v560 = vld [vmem:[#allocation7 + $0x5c0] sm:$0xff]
        %v561 = vld [vmem:[#allocation7 + $0x5c8] sm:$0xff]
        %v562 = vld [vmem:[#allocation7 + $0x5d0] sm:$0xff]
        %v563 = vld [vmem:[#allocation7 + $0x5d8] sm:$0xff]
        %v564 = vld [vmem:[#allocation7 + $0x5e0] sm:$0xff]
        %v565 = vld [vmem:[#allocation7 + $0x5e8] sm:$0xff]
        %v566 = vld [vmem:[#allocation7 + $0x5f0] sm:$0xff]
        %v567 = vld [vmem:[#allocation7 + $0x5f8] sm:$0xff]
        %v568 = vld [vmem:[#allocation7 + $0x600] sm:$0xff]
        %v569 = vld [vmem:[#allocation7 + $0x608] sm:$0xff]
        %v570 = vld [vmem:[#allocation7 + $0x610] sm:$0xff]
        %v571 = vld [vmem:[#allocation7 + $0x618] sm:$0xff]
        %v572 = vld [vmem:[#allocation7 + $0x620] sm:$0xff]
        %v573 = vld [vmem:[#allocation7 + $0x628] sm:$0xff]
        %v574 = vld [vmem:[#allocation7 + $0x630] sm:$0xff]
        %v575 = vld [vmem:[#allocation7 + $0x638] sm:$0xff]
        %v576 = vld [vmem:[#allocation7 + $0x640] sm:$0xff]
        %v577 = vld [vmem:[#allocation7 + $0x648] sm:$0xff]
        %v578 = vld [vmem:[#allocation7 + $0x650] sm:$0xff]
        %v579 = vld [vmem:[#allocation7 + $0x658] sm:$0xff]
        %v580 = vld [vmem:[#allocation7 + $0x660] sm:$0xff]
        %v581 = vld [vmem:[#allocation7 + $0x668] sm:$0xff]
        %v582 = vld [vmem:[#allocation7 + $0x670] sm:$0xff]
        %v583 = vld [vmem:[#allocation7 + $0x678] sm:$0xff]
        %v584 = vld [vmem:[#allocation7 + $0x680] sm:$0xff]
        %v585 = vld [vmem:[#allocation7 + $0x688] sm:$0xff]
        %v586 = vld [vmem:[#allocation7 + $0x690] sm:$0xff]
        %v587 = vld [vmem:[#allocation7 + $0x698] sm:$0xff]
        %v588 = vld [vmem:[#allocation7 + $0x6a0] sm:$0xff]
        %v589 = vld [vmem:[#allocation7 + $0x6a8] sm:$0xff]
        %v590 = vld [vmem:[#allocation7 + $0x6b0] sm:$0xff]
        %v591 = vld [vmem:[#allocation7 + $0x6b8] sm:$0xff]
        %v592 = vld [vmem:[#allocation7 + $0x6c0] sm:$0xff]
        %v593 = vld [vmem:[#allocation7 + $0x6c8] sm:$0xff]
        %v594 = vld [vmem:[#allocation7 + $0x6d0] sm:$0xff]
        %v595 = vld [vmem:[#allocation7 + $0x6d8] sm:$0xff]
        %v596 = vld [vmem:[#allocation7 + $0x6e0] sm:$0xff]
        %v597 = vld [vmem:[#allocation7 + $0x6e8] sm:$0xff]
        %v598 = vld [vmem:[#allocation7 + $0x6f0] sm:$0xff]
        %v599 = vld [vmem:[#allocation7 + $0x6f8] sm:$0xff]
        %v600 = vld [vmem:[#allocation7 + $0x700] sm:$0xff]
        %v601 = vld [vmem:[#allocation7 + $0x708] sm:$0xff]
        %v602 = vld [vmem:[#allocation7 + $0x710] sm:$0xff]
        %v603 = vld [vmem:[#allocation7 + $0x718] sm:$0xff]
        %v604 = vld [vmem:[#allocation7 + $0x720] sm:$0xff]
        %v605 = vld [vmem:[#allocation7 + $0x728] sm:$0xff]
        %v606 = vld [vmem:[#allocation7 + $0x730] sm:$0xff]
        %v607 = vld [vmem:[#allocation7 + $0x738] sm:$0xff]
        %v608 = vld [vmem:[#allocation7 + $0x740] sm:$0xff]
        %v609 = vld [vmem:[#allocation7 + $0x748] sm:$0xff]
        %v610 = vld [vmem:[#allocation7 + $0x750] sm:$0xff]
        %v611 = vld [vmem:[#allocation7 + $0x758] sm:$0xff]
        %v612 = vld [vmem:[#allocation7 + $0x760] sm:$0xff]
        %v613 = vld [vmem:[#allocation7 + $0x768] sm:$0xff]
        %v614 = vld [vmem:[#allocation7 + $0x770] sm:$0xff]
        %v615 = vld [vmem:[#allocation7 + $0x778] sm:$0xff]
        %v616 = vld [vmem:[#allocation7 + $0x780] sm:$0xff]
        %v617 = vld [vmem:[#allocation7 + $0x788] sm:$0xff]
        %v618 = vld [vmem:[#allocation7 + $0x790] sm:$0xff]
        %v619 = vld [vmem:[#allocation7 + $0x798] sm:$0xff]
        %v620 = vld [vmem:[#allocation7 + $0x7a0] sm:$0xff]
        %v621 = vld [vmem:[#allocation7 + $0x7a8] sm:$0xff]
        %v622 = vld [vmem:[#allocation7 + $0x7b0] sm:$0xff]
        %v623 = vld [vmem:[#allocation7 + $0x7b8] sm:$0xff]
        %v624 = vld [vmem:[#allocation7 + $0x7c0] sm:$0xff]
        %v625 = vld [vmem:[#allocation7 + $0x7c8] sm:$0xff]
        %v626 = vld [vmem:[#allocation7 + $0x7d0] sm:$0xff]
        %v627 = vld [vmem:[#allocation7 + $0x7d8] sm:$0xff]
        %v628 = vld [vmem:[#allocation7 + $0x7e0] sm:$0xff]
        %v629 = vld [vmem:[#allocation7 + $0x7e8] sm:$0xff]
        %v630 = vld [vmem:[#allocation7 + $0x7f0] sm:$0xff]
        %v631 = vld [vmem:[#allocation7 + $0x7f8] sm:$0xff]
        %v632 = vld [vmem:[#allocation7 + $0x800] sm:$0xff]
        %v633 = vld [vmem:[#allocation7 + $0x808] sm:$0xff]
        %v634 = vld [vmem:[#allocation7 + $0x810] sm:$0xff]
        %v635 = vld [vmem:[#allocation7 + $0x818] sm:$0xff]
        %v636 = vld [vmem:[#allocation7 + $0x820] sm:$0xff]
        %v637 = vld [vmem:[#allocation7 + $0x828] sm:$0xff]
        %v638 = vld [vmem:[#allocation7 + $0x830] sm:$0xff]
        %v639 = vld [vmem:[#allocation7 + $0x838] sm:$0xff]
        %v640 = vld [vmem:[#allocation7 + $0x840] sm:$0xff]
        %v641 = vld [vmem:[#allocation7 + $0x848] sm:$0xff]
        %v642 = vld [vmem:[#allocation7 + $0x850] sm:$0xff]
        %v643 = vld [vmem:[#allocation7 + $0x858] sm:$0xff]
        %v644 = vld [vmem:[#allocation7 + $0x860] sm:$0xff]
        %v645 = vld [vmem:[#allocation7 + $0x868] sm:$0xff]
        %v646 = vld [vmem:[#allocation7 + $0x870] sm:$0xff]
        %v647 = vld [vmem:[#allocation7 + $0x878] sm:$0xff]
        %v648 = vld [vmem:[#allocation7 + $0x880] sm:$0xff]
        %v649 = vld [vmem:[#allocation7 + $0x888] sm:$0xff]
        %v650 = vld [vmem:[#allocation7 + $0x890] sm:$0xff]
        %v651 = vld [vmem:[#allocation7 + $0x898] sm:$0xff]
        %v652 = vld [vmem:[#allocation7 + $0x8a0] sm:$0xff]
        %v653 = vld [vmem:[#allocation7 + $0x8a8] sm:$0xff]
        %v654 = vld [vmem:[#allocation7 + $0x8b0] sm:$0xff]
        %v655 = vld [vmem:[#allocation7 + $0x8b8] sm:$0xff]
        %v656 = vld [vmem:[#allocation7 + $0x8c0] sm:$0xff]
        %v657 = vld [vmem:[#allocation7 + $0x8c8] sm:$0xff]
        %v658 = vld [vmem:[#allocation7 + $0x8d0] sm:$0xff]
        %v659 = vld [vmem:[#allocation7 + $0x8d8] sm:$0xff]
        %v660 = vld [vmem:[#allocation7 + $0x8e0] sm:$0xff]
        %v661 = vld [vmem:[#allocation7 + $0x8e8] sm:$0xff]
        %v662 = vld [vmem:[#allocation7 + $0x8f0] sm:$0xff]
        %v663 = vld [vmem:[#allocation7 + $0x8f8] sm:$0xff]
        %v664 = vld [vmem:[#allocation8] sm:$0xff]
        %v665 = vld [vmem:[%s5] sm:$0xff]
        %v666 = vld [vmem:[#allocation10] sm:$0xff]
        %v667 = vld [vmem:[%s7] sm:$0xff]
        %v668 = vld [vmem:[%s325] sm:$0xff]
        %670 = vset.pattern.permute.xlu0 0
        %671 = vperm.xlu0 %670, %v375
        %v672 = vpop.permute.xlu0 %671
        %v675 = vcombine.high %v668, %v668
        %vm676 = vcmask 31744
        %v678 = vsel %vm676, %v374, 0
        %vm680 = vcmask 1043456
        %v681 = vsel %vm680, %v668, 0
        %v683 = vsel %vm680, %v675, 0
        %685 = vmatprep.subr.mxu0 %v683
        %686 = vmatpush1.msra.mxu0 %v681
        %687 = vmatprep.subr.mxu0 0.0
        %688 = vmatpush1.msra.mxu0 0.0
        %689 = vmatprep.subr.mxu0 0.0
        %690 = vmatpush1.msra.mxu0 0.0
        %691 = vmatprep.subr.mxu0 0.0
        %692 = vmatpush1.msra.mxu0 0.0
        %693 = vmatprep.subr.mxu0 0.0
        %694 = vmatpush1.msra.mxu0 0.0
        %695 = vmatprep.subr.mxu0 0.0
        %696 = vmatpush1.msra.mxu0 0.0
        %697 = vmatprep.subr.mxu0 0.0
        %698 = vmatpush1.msra.mxu0 0.0
        %699 = vmatprep.subr.mxu0 0.0
        %700 = vmatpush1.msra.mxu0 0.0
        %701 = vmatprep.subr.mxu0 0.0
        %702 = vmatpush1.msra.mxu0 0.0
        %703 = vmatprep.subr.mxu0 0.0
        %704 = vmatpush1.msra.mxu0 0.0
        %705 = vmatprep.subr.mxu0 0.0
        %706 = vmatpush1.msra.mxu0 0.0
        %707 = vmatprep.subr.mxu0 0.0
        %708 = vmatpush1.msra.mxu0 0.0
        %709 = vmatprep.subr.mxu0 0.0
        %710 = vmatpush1.msra.mxu0 0.0
        %711 = vmatprep.subr.mxu0 0.0
        %712 = vmatpush1.msra.mxu0 0.0
        %713 = vmatprep.subr.mxu0 0.0
        %714 = vmatpush1.msra.mxu0 0.0
        %715 = vmatprep.subr.mxu0 0.0
        %716 = vmatpush1.msra.mxu0 0.0
        %717 = vmatprep.subr.mxu0 0.0
        %718 = vmatpush1.msra.mxu0 0.0
        %719 = vmatprep.subr.mxu0 0.0
        %720 = vmatpush1.msra.mxu0 0.0
        %721 = vmatprep.subr.mxu0 0.0
        %722 = vmatpush1.msra.mxu0 0.0
        %723 = vmatprep.subr.mxu0 0.0
        %724 = vmatpush1.msra.mxu0 0.0
        %725 = vmatprep.subr.mxu0 0.0
        %726 = vmatpush1.msra.mxu0 0.0
        %727 = vmatprep.subr.mxu0 0.0
        %728 = vmatpush1.msra.mxu0 0.0
        %729 = vmatprep.subr.mxu0 0.0
        %730 = vmatpush1.msra.mxu0 0.0
        %731 = vmatprep.subr.mxu0 0.0
        %732 = vmatpush1.msra.mxu0 0.0
        %733 = vmatprep.subr.mxu0 0.0
        %734 = vmatpush1.msra.mxu0 0.0
        %735 = vmatprep.subr.mxu0 0.0
        %736 = vmatpush1.msra.mxu0 0.0
        %737 = vmatprep.subr.mxu0 0.0
        %738 = vmatpush1.msra.mxu0 0.0
        %739 = vmatprep.subr.mxu0 0.0
        %740 = vmatpush1.msra.mxu0 0.0
        %741 = vmatprep.subr.mxu0 0.0
        %742 = vmatpush1.msra.mxu0 0.0
        %743 = vmatprep.subr.mxu0 0.0
        %744 = vmatpush1.msra.mxu0 0.0
        %745 = vmatprep.subr.mxu0 0.0
        %746 = vmatpush1.msra.mxu0 0.0
        %747 = vmatprep.subr.mxu0 0.0
        %748 = vmatpush1.msra.mxu0 0.0
        %749 = vmatprep.mubr.f32.mxu0 0.0
        %750 = vmatmul.mubr.f32.gmra.mrb[0].mxu0 %v678
        %v751 = vpop.f32.mrb[0].mxu0
        %v752 = vadd.f32 %v672, %v751
        %v753 = vpop.f32.mrb[0].mxu0
        %v754 = vadd.f32 %v672, %v753
        %755 = vdwg.mxu0
        %v756 = vmax.f32 %v752, 0.0
        %v757 = vmax.f32 %v754, 0.0
        %v761 = vrot.slane %v756, 4
        %v762 = vrot.slane %v757, 4
        %v765 = vsel %vm680, %v668, %v761
        %v766 = vsel %vm680, %v675, %v762
        %767 = vmatprep.subr.mxu0 %v377
        %768 = vmatpush1.msra.mxu0 %v376
        %769 = vmatprep.subr.mxu0 %v386
        %770 = vmatpush1.msra.mxu0 %v385
        %771 = vmatprep.subr.mxu0 %v395
        %772 = vmatpush1.msra.mxu0 %v394
        %773 = vmatprep.subr.mxu0 %v404
        %774 = vmatpush1.msra.mxu0 %v403
        %775 = vmatprep.subr.mxu0 %v413
        %776 = vmatpush1.msra.mxu0 %v412
        %777 = vmatprep.subr.mxu0 %v422
        %778 = vmatpush1.msra.mxu0 %v421
        %779 = vmatprep.subr.mxu0 %v431
        %780 = vmatpush1.msra.mxu0 %v430
        %781 = vmatprep.subr.mxu0 %v440
        %782 = vmatpush1.msra.mxu0 %v439
        %783 = vmatprep.subr.mxu0 %v449
        %784 = vmatpush1.msra.mxu0 %v448
        %785 = vmatprep.subr.mxu0 %v458
        %786 = vmatpush1.msra.mxu0 %v457
        %787 = vmatprep.subr.mxu0 %v467
        %788 = vmatpush1.msra.mxu0 %v466
        %789 = vmatprep.subr.mxu0 %v476
        %790 = vmatpush1.msra.mxu0 %v475
        %791 = vmatprep.subr.mxu0 %v485
        %792 = vmatpush1.msra.mxu0 %v484
        %793 = vmatprep.subr.mxu0 %v494
        %794 = vmatpush1.msra.mxu0 %v493
        %795 = vmatprep.subr.mxu0 %v503
        %796 = vmatpush1.msra.mxu0 %v502
        %797 = vmatprep.subr.mxu0 %v512
        %798 = vmatpush1.msra.mxu0 %v511
        %799 = vmatprep.subr.mxu0 %v521
        %800 = vmatpush1.msra.mxu0 %v520
        %801 = vmatprep.subr.mxu0 %v530
        %802 = vmatpush1.msra.mxu0 %v529
        %803 = vmatprep.subr.mxu0 %v539
        %804 = vmatpush1.msra.mxu0 %v538
        %805 = vmatprep.subr.mxu0 %v548
        %806 = vmatpush1.msra.mxu0 %v547
        %807 = vmatprep.subr.mxu0 %v557
        %808 = vmatpush1.msra.mxu0 %v556
        %809 = vmatprep.subr.mxu0 %v566
        %810 = vmatpush1.msra.mxu0 %v565
        %811 = vmatprep.subr.mxu0 %v575
        %812 = vmatpush1.msra.mxu0 %v574
        %813 = vmatprep.subr.mxu0 %v584
        %814 = vmatpush1.msra.mxu0 %v583
        %815 = vmatprep.subr.mxu0 %v593
        %816 = vmatpush1.msra.mxu0 %v592
        %817 = vmatprep.subr.mxu0 %v602
        %818 = vmatpush1.msra.mxu0 %v601
        %819 = vmatprep.subr.mxu0 %v611
        %820 = vmatpush1.msra.mxu0 %v610
        %821 = vmatprep.subr.mxu0 %v620
        %822 = vmatpush1.msra.mxu0 %v619
        %823 = vmatprep.subr.mxu0 %v629
        %824 = vmatpush1.msra.mxu0 %v628
        %825 = vmatprep.subr.mxu0 %v638
        %826 = vmatpush1.msra.mxu0 %v637
        %827 = vmatprep.subr.mxu0 %v647
        %828 = vmatpush1.msra.mxu0 %v646
        %829 = vmatprep.subr.mxu0 %v656
        %830 = vmatpush1.msra.mxu0 %v655
        %831 = vmatprep.mubr.f32.mxu0 %v766
        %832 = vmatmul.mubr.f32.gmra.mrb[0].mxu0 %v765
        %v833 = vpop.f32.mrb[0].mxu0
        %v834 = vadd.f32 0.0, %v833
        %v835 = vpop.f32.mrb[0].mxu0
        %v836 = vadd.f32 0.0, %v835
        %837 = vdwg.mxu0
        %838 = vmatprep.subr.mxu0 %v379
        %839 = vmatpush1.msra.mxu0 %v378
        %840 = vmatprep.subr.mxu0 %v388
        %841 = vmatpush1.msra.mxu0 %v387
        %842 = vmatprep.subr.mxu0 %v397
        %843 = vmatpush1.msra.mxu0 %v396
        %844 = vmatprep.subr.mxu0 %v406
        %845 = vmatpush1.msra.mxu0 %v405
        %846 = vmatprep.subr.mxu0 %v415
        %847 = vmatpush1.msra.mxu0 %v414
        %848 = vmatprep.subr.mxu0 %v424
        %849 = vmatpush1.msra.mxu0 %v423
        %850 = vmatprep.subr.mxu0 %v433
        %851 = vmatpush1.msra.mxu0 %v432
        %852 = vmatprep.subr.mxu0 %v442
        %853 = vmatpush1.msra.mxu0 %v441
        %854 = vmatprep.subr.mxu0 %v451
        %855 = vmatpush1.msra.mxu0 %v450
        %856 = vmatprep.subr.mxu0 %v460
        %857 = vmatpush1.msra.mxu0 %v459
        %858 = vmatprep.subr.mxu0 %v469
        %859 = vmatpush1.msra.mxu0 %v468
        %860 = vmatprep.subr.mxu0 %v478
        %861 = vmatpush1.msra.mxu0 %v477
        %862 = vmatprep.subr.mxu0 %v487
        %863 = vmatpush1.msra.mxu0 %v486
        %864 = vmatprep.subr.mxu0 %v496
        %865 = vmatpush1.msra.mxu0 %v495
        %866 = vmatprep.subr.mxu0 %v505
        %867 = vmatpush1.msra.mxu0 %v504
        %868 = vmatprep.subr.mxu0 %v514
        %869 = vmatpush1.msra.mxu0 %v513
        %870 = vmatprep.subr.mxu0 %v523
        %871 = vmatpush1.msra.mxu0 %v522
        %872 = vmatprep.subr.mxu0 %v532
        %873 = vmatpush1.msra.mxu0 %v531
        %874 = vmatprep.subr.mxu0 %v541
        %875 = vmatpush1.msra.mxu0 %v540
        %876 = vmatprep.subr.mxu0 %v550
        %877 = vmatpush1.msra.mxu0 %v549
        %878 = vmatprep.subr.mxu0 %v559
        %879 = vmatpush1.msra.mxu0 %v558
        %880 = vmatprep.subr.mxu0 %v568
        %881 = vmatpush1.msra.mxu0 %v567
        %882 = vmatprep.subr.mxu0 %v577
        %883 = vmatpush1.msra.mxu0 %v576
        %884 = vmatprep.subr.mxu0 %v586
        %885 = vmatpush1.msra.mxu0 %v585
        %886 = vmatprep.subr.mxu0 %v595
        %887 = vmatpush1.msra.mxu0 %v594
        %888 = vmatprep.subr.mxu0 %v604
        %889 = vmatpush1.msra.mxu0 %v603
        %890 = vmatprep.subr.mxu0 %v613
        %891 = vmatpush1.msra.mxu0 %v612
        %892 = vmatprep.subr.mxu0 %v622
        %893 = vmatpush1.msra.mxu0 %v621
        %894 = vmatprep.subr.mxu0 %v631
        %895 = vmatpush1.msra.mxu0 %v630
        %896 = vmatprep.subr.mxu0 %v640
        %897 = vmatpush1.msra.mxu0 %v639
        %898 = vmatprep.subr.mxu0 %v649
        %899 = vmatpush1.msra.mxu0 %v648
        %900 = vmatprep.subr.mxu0 %v658
        %901 = vmatpush1.msra.mxu0 %v657
        %902 = vmatprep.mubr.f32.mxu0 %v766
        %903 = vmatmul.mubr.f32.gmra.mrb[0].mxu0 %v765
        %v904 = vpop.f32.mrb[0].mxu0
        %v905 = vadd.f32 0.0, %v904
        %v906 = vpop.f32.mrb[0].mxu0
        %v907 = vadd.f32 0.0, %v906
        %908 = vdwg.mxu0
        %909 = vmatprep.subr.mxu0 %v381
        %910 = vmatpush1.msra.mxu0 %v380
        %911 = vmatprep.subr.mxu0 %v390
        %912 = vmatpush1.msra.mxu0 %v389
        %913 = vmatprep.subr.mxu0 %v399
        %914 = vmatpush1.msra.mxu0 %v398
        %915 = vmatprep.subr.mxu0 %v408
        %916 = vmatpush1.msra.mxu0 %v407
        %917 = vmatprep.subr.mxu0 %v417
        %918 = vmatpush1.msra.mxu0 %v416
        %919 = vmatprep.subr.mxu0 %v426
        %920 = vmatpush1.msra.mxu0 %v425
        %921 = vmatprep.subr.mxu0 %v435
        %922 = vmatpush1.msra.mxu0 %v434
        %923 = vmatprep.subr.mxu0 %v444
        %924 = vmatpush1.msra.mxu0 %v443
        %925 = vmatprep.subr.mxu0 %v453
        %926 = vmatpush1.msra.mxu0 %v452
        %927 = vmatprep.subr.mxu0 %v462
        %928 = vmatpush1.msra.mxu0 %v461
        %929 = vmatprep.subr.mxu0 %v471
        %930 = vmatpush1.msra.mxu0 %v470
        %931 = vmatprep.subr.mxu0 %v480
        %932 = vmatpush1.msra.mxu0 %v479
        %933 = vmatprep.subr.mxu0 %v489
        %934 = vmatpush1.msra.mxu0 %v488
        %935 = vmatprep.subr.mxu0 %v498
        %936 = vmatpush1.msra.mxu0 %v497
        %937 = vmatprep.subr.mxu0 %v507
        %938 = vmatpush1.msra.mxu0 %v506
        %939 = vmatprep.subr.mxu0 %v516
        %940 = vmatpush1.msra.mxu0 %v515
        %941 = vmatprep.subr.mxu0 %v525
        %942 = vmatpush1.msra.mxu0 %v524
        %943 = vmatprep.subr.mxu0 %v534
        %944 = vmatpush1.msra.mxu0 %v533
        %945 = vmatprep.subr.mxu0 %v543
        %946 = vmatpush1.msra.mxu0 %v542
        %947 = vmatprep.subr.mxu0 %v552
        %948 = vmatpush1.msra.mxu0 %v551
        %949 = vmatprep.subr.mxu0 %v561
        %950 = vmatpush1.msra.mxu0 %v560
        %951 = vmatprep.subr.mxu0 %v570
        %952 = vmatpush1.msra.mxu0 %v569
        %953 = vmatprep.subr.mxu0 %v579
        %954 = vmatpush1.msra.mxu0 %v578
        %955 = vmatprep.subr.mxu0 %v588
        %956 = vmatpush1.msra.mxu0 %v587
        %957 = vmatprep.subr.mxu0 %v597
        %958 = vmatpush1.msra.mxu0 %v596
        %959 = vmatprep.subr.mxu0 %v606
        %960 = vmatpush1.msra.mxu0 %v605
        %961 = vmatprep.subr.mxu0 %v615
        %962 = vmatpush1.msra.mxu0 %v614
        %963 = vmatprep.subr.mxu0 %v624
        %964 = vmatpush1.msra.mxu0 %v623
        %965 = vmatprep.subr.mxu0 %v633
        %966 = vmatpush1.msra.mxu0 %v632
        %967 = vmatprep.subr.mxu0 %v642
        %968 = vmatpush1.msra.mxu0 %v641
        %969 = vmatprep.subr.mxu0 %v651
        %970 = vmatpush1.msra.mxu0 %v650
        %971 = vmatprep.subr.mxu0 %v660
        %972 = vmatpush1.msra.mxu0 %v659
        %973 = vmatprep.mubr.f32.mxu0 %v766
        %974 = vmatmul.mubr.f32.gmra.mrb[0].mxu0 %v765
        %v975 = vpop.f32.mrb[0].mxu0
        %v976 = vadd.f32 0.0, %v975
        %v977 = vpop.f32.mrb[0].mxu0
        %v978 = vadd.f32 0.0, %v977
        %979 = vdwg.mxu0
        %980 = vmatprep.subr.mxu0 %v383
        %981 = vmatpush1.msra.mxu0 %v382
        %982 = vmatprep.subr.mxu0 %v392
        %983 = vmatpush1.msra.mxu0 %v391
        %984 = vmatprep.subr.mxu0 %v401
        %985 = vmatpush1.msra.mxu0 %v400
        %986 = vmatprep.subr.mxu0 %v410
        %987 = vmatpush1.msra.mxu0 %v409
        %988 = vmatprep.subr.mxu0 %v419
        %989 = vmatpush1.msra.mxu0 %v418
        %990 = vmatprep.subr.mxu0 %v428
        %991 = vmatpush1.msra.mxu0 %v427
        %992 = vmatprep.subr.mxu0 %v437
        %993 = vmatpush1.msra.mxu0 %v436
        %994 = vmatprep.subr.mxu0 %v446
        %995 = vmatpush1.msra.mxu0 %v445
        %996 = vmatprep.subr.mxu0 %v455
        %997 = vmatpush1.msra.mxu0 %v454
        %998 = vmatprep.subr.mxu0 %v464
        %999 = vmatpush1.msra.mxu0 %v463
        %1000 = vmatprep.subr.mxu0 %v473
        %1001 = vmatpush1.msra.mxu0 %v472
        %1002 = vmatprep.subr.mxu0 %v482
        %1003 = vmatpush1.msra.mxu0 %v481
        %1004 = vmatprep.subr.mxu0 %v491
        %1005 = vmatpush1.msra.mxu0 %v490
        %1006 = vmatprep.subr.mxu0 %v500
        %1007 = vmatpush1.msra.mxu0 %v499
        %1008 = vmatprep.subr.mxu0 %v509
        %1009 = vmatpush1.msra.mxu0 %v508
        %1010 = vmatprep.subr.mxu0 %v518
        %1011 = vmatpush1.msra.mxu0 %v517
        %1012 = vmatprep.subr.mxu0 %v527
        %1013 = vmatpush1.msra.mxu0 %v526
        %1014 = vmatprep.subr.mxu0 %v536
        %1015 = vmatpush1.msra.mxu0 %v535
        %1016 = vmatprep.subr.mxu0 %v545
        %1017 = vmatpush1.msra.mxu0 %v544
        %1018 = vmatprep.subr.mxu0 %v554
        %1019 = vmatpush1.msra.mxu0 %v553
        %1020 = vmatprep.subr.mxu0 %v563
        %1021 = vmatpush1.msra.mxu0 %v562
        %1022 = vmatprep.subr.mxu0 %v572
        %1023 = vmatpush1.msra.mxu0 %v571
        %1024 = vmatprep.subr.mxu0 %v581
        %1025 = vmatpush1.msra.mxu0 %v580
        %1026 = vmatprep.subr.mxu0 %v590
        %1027 = vmatpush1.msra.mxu0 %v589
        %1028 = vmatprep.subr.mxu0 %v599
        %1029 = vmatpush1.msra.mxu0 %v598
        %1030 = vmatprep.subr.mxu0 %v608
        %1031 = vmatpush1.msra.mxu0 %v607
        %1032 = vmatprep.subr.mxu0 %v617
        %1033 = vmatpush1.msra.mxu0 %v616
        %1034 = vmatprep.subr.mxu0 %v626
        %1035 = vmatpush1.msra.mxu0 %v625
        %1036 = vmatprep.subr.mxu0 %v635
        %1037 = vmatpush1.msra.mxu0 %v634
        %1038 = vmatprep.subr.mxu0 %v644
        %1039 = vmatpush1.msra.mxu0 %v643
        %1040 = vmatprep.subr.mxu0 %v653
        %1041 = vmatpush1.msra.mxu0 %v652
        %1042 = vmatprep.subr.mxu0 %v662
        %1043 = vmatpush1.msra.mxu0 %v661
        %1044 = vmatprep.mubr.f32.mxu0 %v766
        %1045 = vmatmul.mubr.f32.gmra.mrb[0].mxu0 %v765
        %v1046 = vpop.f32.mrb[0].mxu0
        %v1047 = vadd.f32 0.0, %v1046
        %v1048 = vpop.f32.mrb[0].mxu0
        %v1049 = vadd.f32 0.0, %v1048
        %1050 = vdwg.mxu0
        %1051 = vmatprep.subr.mxu0 0.0
        %1052 = vmatpush1.msra.mxu0 %v384
        %1053 = vmatprep.subr.mxu0 0.0
        %1054 = vmatpush1.msra.mxu0 %v393
        %1055 = vmatprep.subr.mxu0 0.0
        %1056 = vmatpush1.msra.mxu0 %v402
        %1057 = vmatprep.subr.mxu0 0.0
        %1058 = vmatpush1.msra.mxu0 %v411
        %1059 = vmatprep.subr.mxu0 0.0
        %1060 = vmatpush1.msra.mxu0 %v420
        %1061 = vmatprep.subr.mxu0 0.0
        %1062 = vmatpush1.msra.mxu0 %v429
        %1063 = vmatprep.subr.mxu0 0.0
        %1064 = vmatpush1.msra.mxu0 %v438
        %1065 = vmatprep.subr.mxu0 0.0
        %1066 = vmatpush1.msra.mxu0 %v447
        %1067 = vmatprep.subr.mxu0 0.0
        %1068 = vmatpush1.msra.mxu0 %v456
        %1069 = vmatprep.subr.mxu0 0.0
        %1070 = vmatpush1.msra.mxu0 %v465
        %1071 = vmatprep.subr.mxu0 0.0
        %1072 = vmatpush1.msra.mxu0 %v474
        %1073 = vmatprep.subr.mxu0 0.0
        %1074 = vmatpush1.msra.mxu0 %v483
        %1075 = vmatprep.subr.mxu0 0.0
        %1076 = vmatpush1.msra.mxu0 %v492
        %1077 = vmatprep.subr.mxu0 0.0
        %1078 = vmatpush1.msra.mxu0 %v501
        %1079 = vmatprep.subr.mxu0 0.0
        %1080 = vmatpush1.msra.mxu0 %v510
        %1081 = vmatprep.subr.mxu0 0.0
        %1082 = vmatpush1.msra.mxu0 %v519
        %1083 = vmatprep.subr.mxu0 0.0
        %1084 = vmatpush1.msra.mxu0 %v528
        %1085 = vmatprep.subr.mxu0 0.0
        %1086 = vmatpush1.msra.mxu0 %v537
        %1087 = vmatprep.subr.mxu0 0.0
        %1088 = vmatpush1.msra.mxu0 %v546
        %1089 = vmatprep.subr.mxu0 0.0
        %1090 = vmatpush1.msra.mxu0 %v555
        %1091 = vmatprep.subr.mxu0 0.0
        %1092 = vmatpush1.msra.mxu0 %v564
        %1093 = vmatprep.subr.mxu0 0.0
        %1094 = vmatpush1.msra.mxu0 %v573
        %1095 = vmatprep.subr.mxu0 0.0
        %1096 = vmatpush1.msra.mxu0 %v582
        %1097 = vmatprep.subr.mxu0 0.0
        %1098 = vmatpush1.msra.mxu0 %v591
        %1099 = vmatprep.subr.mxu0 0.0
        %1100 = vmatpush1.msra.mxu0 %v600
        %1101 = vmatprep.subr.mxu0 0.0
        %1102 = vmatpush1.msra.mxu0 %v609
        %1103 = vmatprep.subr.mxu0 0.0
        %1104 = vmatpush1.msra.mxu0 %v618
        %1105 = vmatprep.subr.mxu0 0.0
        %1106 = vmatpush1.msra.mxu0 %v627
        %1107 = vmatprep.subr.mxu0 0.0
        %1108 = vmatpush1.msra.mxu0 %v636
        %1109 = vmatprep.subr.mxu0 0.0
        %1110 = vmatpush1.msra.mxu0 %v645
        %1111 = vmatprep.subr.mxu0 0.0
        %1112 = vmatpush1.msra.mxu0 %v654
        %1113 = vmatprep.subr.mxu0 0.0
        %1114 = vmatpush1.msra.mxu0 %v663
        %1115 = vmatprep.mubr.f32.mxu0 %v766
        %1116 = vmatmul.mubr.f32.gmra.mrb[0].mxu0 %v765
        %v1117 = vpop.f32.mrb[0].mxu0
        %v1118 = vadd.f32 0.0, %v1117
        %v1119 = vpop.f32.mrb[0].mxu0
        %1120 = vdwg.mxu0
        %1122 = vset.pattern.permute.xlu0 0
        %1123 = vperm.xlu0 %1122, %v664
        %v1124 = vpop.permute.xlu0 %1123
        %v1126 = vmul.f32 %v1124, %v834
        %v1127 = vadd.f32 %v1126, 0.0
        %1128 = vset.pattern.permute.xlu0 1
        %1129 = vperm.xlu0 %1128, %v664
        %v1130 = vpop.permute.xlu0 %1129
        %v1132 = vmul.f32 %v1130, %v836
        %v1133 = vadd.f32 %v1127, %v1132
        %1134 = vset.pattern.permute.xlu0 2
        %1135 = vperm.xlu0 %1134, %v664
        %v1136 = vpop.permute.xlu0 %1135
        %v1138 = vmul.f32 %v1136, %v905
        %v1139 = vadd.f32 %v1133, %v1138
        %1140 = vset.pattern.permute.xlu0 3
        %1141 = vperm.xlu0 %1140, %v664
        %v1142 = vpop.permute.xlu0 %1141
        %v1144 = vmul.f32 %v1142, %v907
        %v1145 = vadd.f32 %v1139, %v1144
        %1146 = vset.pattern.permute.xlu0 4
        %1147 = vperm.xlu0 %1146, %v664
        %v1148 = vpop.permute.xlu0 %1147
        %v1150 = vmul.f32 %v1148, %v976
        %v1151 = vadd.f32 %v1145, %v1150
        %1152 = vset.pattern.permute.xlu0 5
        %1153 = vperm.xlu0 %1152, %v664
        %v1154 = vpop.permute.xlu0 %1153
        %v1156 = vmul.f32 %v1154, %v978
        %v1157 = vadd.f32 %v1151, %v1156
        %1158 = vset.pattern.permute.xlu0 6
        %1159 = vperm.xlu0 %1158, %v664
        %v1160 = vpop.permute.xlu0 %1159
        %v1162 = vmul.f32 %v1160, %v1047
        %v1163 = vadd.f32 %v1157, %v1162
        %1164 = vset.pattern.permute.xlu0 7
        %1165 = vperm.xlu0 %1164, %v664
        %v1166 = vpop.permute.xlu0 %1165
        %v1168 = vmul.f32 %v1166, %v1049
        %v1169 = vadd.f32 %v1163, %v1168
        %1170 = vset.pattern.permute.xlu0 8
        %1171 = vperm.xlu0 %1170, %v664
        %v1172 = vpop.permute.xlu0 %1171
        %v1174 = vmul.f32 %v1172, %v1118
        %v1175 = vadd.f32 %v1169, %v1174
        %1177 = vset.pattern.permute.xlu0 0
        %1178 = vperm.xlu0 %1177, %v665
        %v1179 = vpop.permute.xlu0 %1178
        %v1181 = vadd.f32 %v1175, %v1179
        %1183 = vset.pattern.permute.xlu0 0
        %1184 = vperm.xlu0 %1183, %v667
        %v1185 = vpop.permute.xlu0 %1184
        %vm1187 = vcmask 64512
        %v1189 = vsel %vm1187, %v666, 0
        %1191 = vmatprep.subr.mxu0 0.0
        %1192 = vmatpush1.msra.mxu0 %v1181
        %1193 = vmatprep.subr.mxu0 0.0
        %1194 = vmatpush1.msra.mxu0 0.0
        %1195 = vmatprep.subr.mxu0 0.0
        %1196 = vmatpush1.msra.mxu0 0.0
        %1197 = vmatprep.subr.mxu0 0.0
        %1198 = vmatpush1.msra.mxu0 0.0
        %1199 = vmatprep.subr.mxu0 0.0
        %1200 = vmatpush1.msra.mxu0 0.0
        %1201 = vmatprep.subr.mxu0 0.0
        %1202 = vmatpush1.msra.mxu0 0.0
        %1203 = vmatprep.subr.mxu0 0.0
        %1204 = vmatpush1.msra.mxu0 0.0
        %1205 = vmatprep.subr.mxu0 0.0
        %1206 = vmatpush1.msra.mxu0 0.0
        %1207 = vmatprep.subr.mxu0 0.0
        %1208 = vmatpush1.msra.mxu0 0.0
        %1209 = vmatprep.subr.mxu0 0.0
        %1210 = vmatpush1.msra.mxu0 0.0
        %1211 = vmatprep.subr.mxu0 0.0
        %1212 = vmatpush1.msra.mxu0 0.0
        %1213 = vmatprep.subr.mxu0 0.0
        %1214 = vmatpush1.msra.mxu0 0.0
        %1215 = vmatprep.subr.mxu0 0.0
        %1216 = vmatpush1.msra.mxu0 0.0
        %1217 = vmatprep.subr.mxu0 0.0
        %1218 = vmatpush1.msra.mxu0 0.0
        %1219 = vmatprep.subr.mxu0 0.0
        %1220 = vmatpush1.msra.mxu0 0.0
        %1221 = vmatprep.subr.mxu0 0.0
        %1222 = vmatpush1.msra.mxu0 0.0
        %1223 = vmatprep.subr.mxu0 0.0
        %1224 = vmatpush1.msra.mxu0 0.0
        %1225 = vmatprep.subr.mxu0 0.0
        %1226 = vmatpush1.msra.mxu0 0.0
        %1227 = vmatprep.subr.mxu0 0.0
        %1228 = vmatpush1.msra.mxu0 0.0
        %1229 = vmatprep.subr.mxu0 0.0
        %1230 = vmatpush1.msra.mxu0 0.0
        %1231 = vmatprep.subr.mxu0 0.0
        %1232 = vmatpush1.msra.mxu0 0.0
        %1233 = vmatprep.subr.mxu0 0.0
        %1234 = vmatpush1.msra.mxu0 0.0
        %1235 = vmatprep.subr.mxu0 0.0
        %1236 = vmatpush1.msra.mxu0 0.0
        %1237 = vmatprep.subr.mxu0 0.0
        %1238 = vmatpush1.msra.mxu0 0.0
        %1239 = vmatprep.subr.mxu0 0.0
        %1240 = vmatpush1.msra.mxu0 0.0
        %1241 = vmatprep.subr.mxu0 0.0
        %1242 = vmatpush1.msra.mxu0 0.0
        %1243 = vmatprep.subr.mxu0 0.0
        %1244 = vmatpush1.msra.mxu0 0.0
        %1245 = vmatprep.subr.mxu0 0.0
        %1246 = vmatpush1.msra.mxu0 0.0
        %1247 = vmatprep.subr.mxu0 0.0
        %1248 = vmatpush1.msra.mxu0 0.0
        %1249 = vmatprep.subr.mxu0 0.0
        %1250 = vmatpush1.msra.mxu0 0.0
        %1251 = vmatprep.subr.mxu0 0.0
        %1252 = vmatpush1.msra.mxu0 0.0
        %1253 = vmatprep.subr.mxu0 0.0
        %1254 = vmatpush1.msra.mxu0 0.0
        %1255 = vmatprep.mubr.f32.mxu0 0.0
        %1256 = vmatmul.mubr.f32.gmra.mrb[0].mxu0 %v1189
        %v1257 = vpop.f32.mrb[0].mxu0
        %v1258 = vadd.f32 %v1185, %v1257
        %v1259 = vpop.f32.mrb[0].mxu0
        %1260 = vdwg.mxu0
        %v1261 = vmax.f32 %v1258, 0.0
        %vm1262 = vcmask 523264
        %1263 = vst.msk [vmem:[%s373] sm:$0xff] %vm1262, %v1261
        %s1264 = sand.u32 %s208, 1
        %s1265 = scalar_lea.sflag [#allocation4], %s1264
        %s1266 = sand.u32 %s208, 1
        %s1267 = smul.addr %s1266, 8
        %s1268 = scalar_lea.vmem [#allocation11], %s1267
        // Predicated region
        $region73: #{tpu_custom_call.1} parent=51 // pred_check
          %p1269 = pneg %p218
        $region74: #{tpu_custom_call.1} parent=51 // pred_check_branch
          %1271 = sbr.rel (%p1269) target = $region76
        $region75: #{tpu_custom_call.1} parent=51 // pred_region
          %s1273 = ssub.s32 128, 128
          %1274 = vsyncadd %s1265, %s1273
          %s1275 = smul.addr %s27, 128
          %s1276 = scalar_lea.hbm %s8, %s1275
          %s1278 = sshll.u32 %s1268, 4
          %s1279 = int_to_ptr.vmem [resolvable:$true] %s1278
          %1281 = dma.vmem_to_hbm [thread:$0]  %s1279, 128, %s1276, %s1265
        $region76: #{tpu_custom_call.1} parent=51 // pred_fallthru
          _
      $region52: #{tpu_custom_call.1} parent=5 // pred_fallthru
        _
      %p1282 = scmp.le.s32.totalorder 2, %s22
      // Predicated region
      $region77: #{tpu_custom_call.1} parent=5 // pred_check
        %p1283 = pneg %p1282
      $region78: #{tpu_custom_call.1} parent=5 // pred_check_branch
        %1285 = sbr.rel (%p1283) target = $region80
      $region79: #{tpu_custom_call.1} parent=5 // pred_region
        %s1286 = ssub.s32 %s22, 2
        // Predicated region
        $region81: #{tpu_custom_call.1} parent=79 // pred_check
          %p1287 = pneg %p224
        $region82: #{tpu_custom_call.1} parent=79 // pred_check_branch
          %1289 = sbr.rel (%p1287) target = $region84
        $region83: #{tpu_custom_call.1} parent=79 // pred_region
          %s1290 = sand.u32 %s209, 1
          %s1291 = scalar_lea.sflag [#allocation4], %s1290
          %s1292 = sand.u32 %s209, 1
          %s1293 = smul.addr %s1292, 8
          %s1294 = scalar_lea.vmem [#allocation11], %s1293
          %1295 = dma.done %s1291, 128
        $region84: #{tpu_custom_call.1} parent=79 // pred_fallthru
          _
      $region80: #{tpu_custom_call.1} parent=5 // pred_fallthru
        _
    $region6: #{tpu_custom_call.1} parent=1 // loop_footer
      %s26 = sadd.s32 1, %s22
    $region7: #{tpu_custom_call.1} parent=1 // loop_footer_branch
      %21 = sbr.rel target = $region3
    $region8: #{tpu_custom_call.1} parent=1 // loop_exit
      _
    %1296 = vsyncpa [#allocation3], 1
    %s1297 = scalar_lea.sflag [#allocation3], 1
    %1298 = vsyncpa %s1297, 1
    %1299 = vsyncpa [#allocation6], 1
    %1300 = vsyncpa [#allocation9], 1
    %1301 = vsyncpa [#allocation4], 1
    %s1302 = scalar_lea.sflag [#allocation4], 1
    %1303 = vsyncpa %s1302, 1

</llo_original>
